<compile_context>
chip_gen: v6e
topology: v6e:2x2x1
jax: 0.10.0
libtpu: 0.0.40
codegen_flags: <defaults>
</compile_context>

<pallas_src>
import functools

import jax
import jax.numpy as jnp
import numpy as np
from jax import lax
from jax.experimental import pallas as pl
from jax.experimental.pallas import tpu as pltpu


def _root_pol_kernel(a_ref, xr_ref, xi_ref, *, order, num_iters, check_every, tol):
    """Durand-Kerner root iteration; complex math as separate real/imag f32.

    Layout: a_ref is (M+1, B_tile) -- coefficient index on sublanes, batch on
    lanes. Outputs xr/xi are (M, B_tile).
    """
    M = order
    Bt = a_ref.shape[1]

    a = a_ref[...]                       # (M+1, Bt)
    inv_a0 = 1.0 / a[0:1, :]             # exact divide, once per tile
    c = a[1:, :] * inv_a0                # monic coefficients c_1..c_M, (M, Bt)

    # Hoist the per-coefficient sublane broadcasts out of the iteration loop
    # (JAX does not CSE broadcast_in_dim inside the loop body).
    cb = [jnp.broadcast_to(c[k:k + 1, :], (M, Bt)) for k in range(M)]

    # Initial estimates z_i = (0.4 + 0.9j)^i, built in-kernel.
    idx = lax.broadcasted_iota(jnp.int32, (M, Bt), 0).astype(jnp.float32)
    log_r = float(np.log(np.hypot(0.4, 0.9)))
    theta = float(np.arctan2(0.9, 0.4))
    mag = jnp.exp(idx * log_r)
    zr0 = mag * jnp.cos(idx * theta)
    zi0 = mag * jnp.sin(idx * theta)

    def dk_step(zr, zi):
        # Horner: p(z) = z^M + c_1 z^{M-1} + ... + c_M
        pr = jnp.ones_like(zr)
        pi = jnp.zeros_like(zi)
        for k in range(M):
            pr, pi = pr * zr - pi * zi + cb[k], pr * zi + pi * zr
        # denominator prod_{j != i} (z_i - z_j): sublane rotations cover every
        # j != i exactly once, so no i==j masking is needed.
        dr = jnp.ones_like(zr)
        di = jnp.zeros_like(zi)
        for s in range(1, M):
            fr = zr - pltpu.roll(zr, shift=s, axis=0)
            fi = zi - pltpu.roll(zi, shift=s, axis=0)
            dr, di = dr * fr - di * fi, dr * fi + di * fr
        # correction delta = p(z) / prod(...) via EUP approximate reciprocal
        # (Durand-Kerner self-corrects; final accuracy unaffected).
        inv_den = pl.reciprocal(dr * dr + di * di, approx=True)
        qr = (pr * dr + pi * di) * inv_den
        qi = (pi * dr - pr * di) * inv_den
        return zr - qr, zi - qi, qr, qi

    tol2 = jnp.float32(tol * tol)

    def cond(carry):
        it, _, _, dmax2 = carry
        # NaN-safe: not(converged) keeps iterating on NaN (matches fixed-iter
        # behaviour) instead of exiting early for the whole tile.
        return jnp.logical_and(it < num_iters, jnp.logical_not(dmax2 <= tol2))

    def chunk(carry):
        it, zr, zi, _ = carry
        qr = jnp.zeros_like(zr)
        qi = jnp.zeros_like(zi)
        for _ in range(check_every):          # unrolled: short, fixed trip count
            zr, zi, qr, qi = dk_step(zr, zi)
        # relative magnitude of the last correction in this chunk
        dmax2 = jnp.max((qr * qr + qi * qi) / (1.0 + zr * zr + zi * zi))
        return it + check_every, zr, zi, dmax2

    _, zr, zi, _ = lax.while_loop(
        cond, chunk, (jnp.int32(0), zr0, zi0, jnp.float32(jnp.inf)))

    xr_ref[...] = zr
    xi_ref[...] = zi


class PolynomialToRoots:
    """JAX / Pallas-TPU port of diffsptk.PolynomialToRoots."""

    def __init__(self, order, out_format="rectangular", num_iters=256,
                 check_every=8, tol=1e-5, batch_tile=128, validate=False):
        assert 1 <= order
        assert batch_tile % 128 == 0, "batch_tile must be a multiple of 128"
        self.order = int(order)
        self.num_iters = int(num_iters)
        self.check_every = int(check_every)
        self.tol = float(tol)
        self.batch_tile = int(batch_tile)
        self.validate = bool(validate)
        if out_format == 0 or out_format == "rectangular":
            self.convert = lambda x: x
        elif out_format == 1 or out_format == "polar":
            # torch.complex(x.abs(), x.angle())
            self.convert = lambda x: lax.complex(jnp.abs(x), jnp.angle(x))
        else:
            raise ValueError(f"out_format {out_format} is not supported")
        # Kept for parity with the torch module's registered buffer; the
        # companion matrix it would build is solved implicitly in the kernel.
        self.eye = jnp.eye(order - 1, order, dtype=jnp.float32)

    def __call__(self, a):
        M = self.order
        a = jnp.asarray(a, jnp.float32)
        if a.shape[-1] != M + 1:
            raise ValueError("dimension of coefficients is wrong")
        batch_shape = a.shape[:-1]
        a2 = a.reshape((-1, M + 1))
        B = a2.shape[0]

        if self.validate:
            # Opt-in only: forces a device->host sync before every launch.
            # Zero leading coefficients otherwise produce inf/NaN roots
            # (instead of raising), same failure mode documented for f32.
            if bool(jax.device_get(jnp.any(a2[:, 0] == 0))):
                raise RuntimeError("leading coefficient must be non-zero")

        Bt = self.batch_tile
        num_tiles = -(-B // Bt)
        B_pad = num_tiles * Bt

        # Lane-dense layout: coefficients on sublanes, batch on lanes.
        a_t = a2.T                                   # (M+1, B)
        if B_pad != B:
            # Pad lanes with z^M - 1 (well-separated roots -> converges fast,
            # never blocks the early-exit; results are discarded).
            pad_col = np.zeros((M + 1, 1), np.float32)
            pad_col[0, 0] = 1.0
            pad_col[M, 0] = -1.0
            pad = jnp.broadcast_to(jnp.asarray(pad_col), (M + 1, B_pad - B))
            a_t = jnp.concatenate([a_t, pad], axis=1)

        kernel = functools.partial(
            _root_pol_kernel, order=M, num_iters=self.num_iters,
            check_every=self.check_every, tol=self.tol)

        xr, xi = pl.pallas_call(
            kernel,
            grid=(num_tiles,),
            in_specs=[pl.BlockSpec((M + 1, Bt), lambda i: (0, i))],
            out_specs=(
                pl.BlockSpec((M, Bt), lambda i: (0, i)),
                pl.BlockSpec((M, Bt), lambda i: (0, i)),
            ),
            out_shape=(
                jax.ShapeDtypeStruct((M, B_pad), jnp.float32),
                jax.ShapeDtypeStruct((M, B_pad), jnp.float32),
            ),
            compiler_params=pltpu.CompilerParams(
                dimension_semantics=("parallel",)),
        )(a_t)

        roots = lax.complex(xr[:, :B].T, xi[:, :B].T)     # (B, M) complex64
        roots = roots.reshape(batch_shape + (M,))
        return self.convert(roots)


if __name__ == "__main__":
    key = jax.random.PRNGKey(0)
    B, order = 8, 8                       # small batch of order-8 polynomials
    a = jax.random.normal(key, (B, order + 1), dtype=jnp.float32)
    # keep the leading coefficient bounded away from zero
    a = a.at[:, 0].set(jnp.where(a[:, 0] >= 0, a[:, 0] + 1.0, a[:, 0] - 1.0))

    root_pol = PolynomialToRoots(order, out_format="rectangular")
    x = root_pol(a)
    x = jax.block_until_ready(x)

    # sanity: the returned roots must (approximately) zero each polynomial
    an = np.asarray(a, dtype=np.float64)
    xn = np.asarray(x, dtype=np.complex128)
    for b in range(B):
        resid = np.abs(np.polyval(an[b], xn[b]))
        scale = np.sum(np.abs(an[b])) * np.maximum(1.0, np.abs(xn[b])) ** order
        assert np.all(resid / scale < 1e-2), f"root residual too large for batch {b}"

    print("KERNEL_OK")
</pallas_src>

<mosaic_0001>
module attributes {stable_mosaic.version = 11 : i64} {
  func.func @_root_pol_kernel(%arg0: i32, %arg1: memref<9x128xf32, #tpu.memory_space<vmem>>, %arg2: memref<8x128xf32, #tpu.memory_space<vmem>>, %arg3: memref<8x128xf32, #tpu.memory_space<vmem>>) attributes {dimension_semantics = [#tpu.dimension_semantics<parallel>], iteration_bounds = array<i64: 1>, scalar_prefetch = 0 : i64, scratch_operands = 0 : i64, tpu.core_type = #tpu.core_type<tc>, window_params = [{transform_indices = @transform_0, window_bounds = array<i64: 9, 128>}, {transform_indices = @transform_1, window_bounds = array<i64: 8, 128>}, {transform_indices = @transform_2, window_bounds = array<i64: 8, 128>}]} {
    %c0 = arith.constant 0 : index
    %c0_0 = arith.constant 0 : index
    %0 = vector.load %arg1[%c0, %c0_0] : memref<9x128xf32, #tpu.memory_space<vmem>>, vector<9x128xf32>
    %1 = vector.extract_strided_slice %0 {offsets = [0, 0], sizes = [1, 128], strides = [1, 1]} : vector<9x128xf32> to vector<1x128xf32>
    %cst = arith.constant 1.000000e+00 : f32
    %2 = vector.broadcast %cst : f32 to vector<1x128xf32>
    %3 = arith.divf %2, %1 : vector<1x128xf32>
    %4 = vector.extract_strided_slice %0 {offsets = [1, 0], sizes = [8, 128], strides = [1, 1]} : vector<9x128xf32> to vector<8x128xf32>
    %5 = vector.broadcast %3 : vector<1x128xf32> to vector<8x128xf32>
    %6 = arith.mulf %4, %5 : vector<8x128xf32>
    %7 = vector.extract_strided_slice %6 {offsets = [0, 0], sizes = [1, 128], strides = [1, 1]} : vector<8x128xf32> to vector<1x128xf32>
    %8 = vector.shape_cast %7 : vector<1x128xf32> to vector<1x128xf32>
    %9 = vector.broadcast %8 : vector<1x128xf32> to vector<8x128xf32>
    %10 = vector.extract_strided_slice %6 {offsets = [1, 0], sizes = [1, 128], strides = [1, 1]} : vector<8x128xf32> to vector<1x128xf32>
    %11 = vector.shape_cast %10 : vector<1x128xf32> to vector<1x128xf32>
    %12 = vector.broadcast %11 : vector<1x128xf32> to vector<8x128xf32>
    %13 = vector.extract_strided_slice %6 {offsets = [2, 0], sizes = [1, 128], strides = [1, 1]} : vector<8x128xf32> to vector<1x128xf32>
    %14 = vector.shape_cast %13 : vector<1x128xf32> to vector<1x128xf32>
    %15 = vector.broadcast %14 : vector<1x128xf32> to vector<8x128xf32>
    %16 = vector.extract_strided_slice %6 {offsets = [3, 0], sizes = [1, 128], strides = [1, 1]} : vector<8x128xf32> to vector<1x128xf32>
    %17 = vector.shape_cast %16 : vector<1x128xf32> to vector<1x128xf32>
    %18 = vector.broadcast %17 : vector<1x128xf32> to vector<8x128xf32>
    %19 = vector.extract_strided_slice %6 {offsets = [4, 0], sizes = [1, 128], strides = [1, 1]} : vector<8x128xf32> to vector<1x128xf32>
    %20 = vector.shape_cast %19 : vector<1x128xf32> to vector<1x128xf32>
    %21 = vector.broadcast %20 : vector<1x128xf32> to vector<8x128xf32>
    %22 = vector.extract_strided_slice %6 {offsets = [5, 0], sizes = [1, 128], strides = [1, 1]} : vector<8x128xf32> to vector<1x128xf32>
    %23 = vector.shape_cast %22 : vector<1x128xf32> to vector<1x128xf32>
    %24 = vector.broadcast %23 : vector<1x128xf32> to vector<8x128xf32>
    %25 = vector.extract_strided_slice %6 {offsets = [6, 0], sizes = [1, 128], strides = [1, 1]} : vector<8x128xf32> to vector<1x128xf32>
    %26 = vector.shape_cast %25 : vector<1x128xf32> to vector<1x128xf32>
    %27 = vector.broadcast %26 : vector<1x128xf32> to vector<8x128xf32>
    %28 = vector.extract_strided_slice %6 {offsets = [7, 0], sizes = [1, 128], strides = [1, 1]} : vector<8x128xf32> to vector<1x128xf32>
    %29 = vector.shape_cast %28 : vector<1x128xf32> to vector<1x128xf32>
    %30 = vector.broadcast %29 : vector<1x128xf32> to vector<8x128xf32>
    %31 = tpu.iota {dimensions = array<i32: 0>} : vector<8x128xi32>
    %32 = arith.sitofp %31 : vector<8x128xi32> to vector<8x128xf32>
    %cst_1 = arith.constant -0.0152296042 : f32
    %33 = vector.broadcast %cst_1 : f32 to vector<8x128xf32>
    %34 = arith.mulf %32, %33 : vector<8x128xf32>
    %35 = math.exp %34 : vector<8x128xf32>
    %cst_2 = arith.constant 1.15257204 : f32
    %36 = vector.broadcast %cst_2 : f32 to vector<8x128xf32>
    %37 = arith.mulf %32, %36 : vector<8x128xf32>
    %38 = math.cos %37 : vector<8x128xf32>
    %39 = arith.mulf %35, %38 : vector<8x128xf32>
    %cst_3 = arith.constant 1.15257204 : f32
    %40 = vector.broadcast %cst_3 : f32 to vector<8x128xf32>
    %41 = arith.mulf %32, %40 : vector<8x128xf32>
    %42 = math.sin %41 : vector<8x128xf32>
    %43 = arith.mulf %35, %42 : vector<8x128xf32>
    %cst_4 = arith.constant 1.000000e-10 : f32
    %c0_i32 = arith.constant 0 : i32
    %cst_5 = arith.constant 0x7F800000 : f32
    %44:4 = scf.while (%arg4 = %c0_i32, %arg5 = %39, %arg6 = %43, %arg7 = %cst_5) : (i32, vector<8x128xf32>, vector<8x128xf32>, f32) -> (i32, vector<8x128xf32>, vector<8x128xf32>, f32) {
      %c256_i32 = arith.constant 256 : i32
      %47 = arith.cmpi slt, %arg4, %c256_i32 : i32
      %48 = arith.cmpf ole, %arg7, %cst_4 : f32
      %true = arith.constant true
      %49 = arith.xori %48, %true : i1
      %50 = arith.andi %47, %49 : i1
      scf.condition(%50) %arg4, %arg5, %arg6, %arg7 : i32, vector<8x128xf32>, vector<8x128xf32>, f32
    } do {
    ^bb0(%arg4: i32, %arg5: vector<8x128xf32>, %arg6: vector<8x128xf32>, %arg7: f32):
      %cst_10 = arith.constant 0.000000e+00 : f32
      %47 = vector.broadcast %cst_10 : f32 to vector<8x128xf32>
      %cst_11 = arith.constant 0.000000e+00 : f32
      %48 = vector.broadcast %cst_11 : f32 to vector<8x128xf32>
      %cst_12 = arith.constant 1.000000e+00 : f32
      %49 = vector.broadcast %cst_12 : f32 to vector<8x128xf32>
      %cst_13 = arith.constant 0.000000e+00 : f32
      %50 = vector.broadcast %cst_13 : f32 to vector<8x128xf32>
      %51 = arith.mulf %49, %arg5 : vector<8x128xf32>
      %52 = arith.mulf %50, %arg6 : vector<8x128xf32>
      %53 = arith.subf %51, %52 : vector<8x128xf32>
      %54 = arith.addf %53, %9 : vector<8x128xf32>
      %55 = arith.mulf %49, %arg6 : vector<8x128xf32>
      %56 = arith.mulf %50, %arg5 : vector<8x128xf32>
      %57 = arith.addf %55, %56 : vector<8x128xf32>
      %58 = arith.mulf %54, %arg5 : vector<8x128xf32>
      %59 = arith.mulf %57, %arg6 : vector<8x128xf32>
      %60 = arith.subf %58, %59 : vector<8x128xf32>
      %61 = arith.addf %60, %12 : vector<8x128xf32>
      %62 = arith.mulf %54, %arg6 : vector<8x128xf32>
      %63 = arith.mulf %57, %arg5 : vector<8x128xf32>
      %64 = arith.addf %62, %63 : vector<8x128xf32>
      %65 = arith.mulf %61, %arg5 : vector<8x128xf32>
      %66 = arith.mulf %64, %arg6 : vector<8x128xf32>
      %67 = arith.subf %65, %66 : vector<8x128xf32>
      %68 = arith.addf %67, %15 : vector<8x128xf32>
      %69 = arith.mulf %61, %arg6 : vector<8x128xf32>
      %70 = arith.mulf %64, %arg5 : vector<8x128xf32>
      %71 = arith.addf %69, %70 : vector<8x128xf32>
      %72 = arith.mulf %68, %arg5 : vector<8x128xf32>
      %73 = arith.mulf %71, %arg6 : vector<8x128xf32>
      %74 = arith.subf %72, %73 : vector<8x128xf32>
      %75 = arith.addf %74, %18 : vector<8x128xf32>
      %76 = arith.mulf %68, %arg6 : vector<8x128xf32>
      %77 = arith.mulf %71, %arg5 : vector<8x128xf32>
      %78 = arith.addf %76, %77 : vector<8x128xf32>
      %79 = arith.mulf %75, %arg5 : vector<8x128xf32>
      %80 = arith.mulf %78, %arg6 : vector<8x128xf32>
      %81 = arith.subf %79, %80 : vector<8x128xf32>
      %82 = arith.addf %81, %21 : vector<8x128xf32>
      %83 = arith.mulf %75, %arg6 : vector<8x128xf32>
      %84 = arith.mulf %78, %arg5 : vector<8x128xf32>
      %85 = arith.addf %83, %84 : vector<8x128xf32>
      %86 = arith.mulf %82, %arg5 : vector<8x128xf32>
      %87 = arith.mulf %85, %arg6 : vector<8x128xf32>
      %88 = arith.subf %86, %87 : vector<8x128xf32>
      %89 = arith.addf %88, %24 : vector<8x128xf32>
      %90 = arith.mulf %82, %arg6 : vector<8x128xf32>
      %91 = arith.mulf %85, %arg5 : vector<8x128xf32>
      %92 = arith.addf %90, %91 : vector<8x128xf32>
      %93 = arith.mulf %89, %arg5 : vector<8x128xf32>
      %94 = arith.mulf %92, %arg6 : vector<8x128xf32>
      %95 = arith.subf %93, %94 : vector<8x128xf32>
      %96 = arith.addf %95, %27 : vector<8x128xf32>
      %97 = arith.mulf %89, %arg6 : vector<8x128xf32>
      %98 = arith.mulf %92, %arg5 : vector<8x128xf32>
      %99 = arith.addf %97, %98 : vector<8x128xf32>
      %100 = arith.mulf %96, %arg5 : vector<8x128xf32>
      %101 = arith.mulf %99, %arg6 : vector<8x128xf32>
      %102 = arith.subf %100, %101 : vector<8x128xf32>
      %103 = arith.addf %102, %30 : vector<8x128xf32>
      %104 = arith.mulf %96, %arg6 : vector<8x128xf32>
      %105 = arith.mulf %99, %arg5 : vector<8x128xf32>
      %106 = arith.addf %104, %105 : vector<8x128xf32>
      %cst_14 = arith.constant 1.000000e+00 : f32
      %107 = vector.broadcast %cst_14 : f32 to vector<8x128xf32>
      %cst_15 = arith.constant 0.000000e+00 : f32
      %108 = vector.broadcast %cst_15 : f32 to vector<8x128xf32>
      %c1_i32 = arith.constant 1 : i32
      %109 = tpu.dynamic_rotate %arg5 by %c1_i32 dim 0 : vector<8x128xf32>, i32 -> vector<8x128xf32>
      %110 = arith.subf %arg5, %109 : vector<8x128xf32>
      %c1_i32_16 = arith.constant 1 : i32
      %111 = tpu.dynamic_rotate %arg6 by %c1_i32_16 dim 0 : vector<8x128xf32>, i32 -> vector<8x128xf32>
      %112 = arith.subf %arg6, %111 : vector<8x128xf32>
      %113 = arith.mulf %107, %110 : vector<8x128xf32>
      %114 = arith.mulf %108, %112 : vector<8x128xf32>
      %115 = arith.subf %113, %114 : vector<8x128xf32>
      %116 = arith.mulf %107, %112 : vector<8x128xf32>
      %117 = arith.mulf %108, %110 : vector<8x128xf32>
      %118 = arith.addf %116, %117 : vector<8x128xf32>
      %c2_i32 = arith.constant 2 : i32
      %119 = tpu.dynamic_rotate %arg5 by %c2_i32 dim 0 : vector<8x128xf32>, i32 -> vector<8x128xf32>
      %120 = arith.subf %arg5, %119 : vector<8x128xf32>
      %c2_i32_17 = arith.constant 2 : i32
      %121 = tpu.dynamic_rotate %arg6 by %c2_i32_17 dim 0 : vector<8x128xf32>, i32 -> vector<8x128xf32>
      %122 = arith.subf %arg6, %121 : vector<8x128xf32>
      %123 = arith.mulf %115, %120 : vector<8x128xf32>
      %124 = arith.mulf %118, %122 : vector<8x128xf32>
      %125 = arith.subf %123, %124 : vector<8x128xf32>
      %126 = arith.mulf %115, %122 : vector<8x128xf32>
      %127 = arith.mulf %118, %120 : vector<8x128xf32>
      %128 = arith.addf %126, %127 : vector<8x128xf32>
      %c3_i32 = arith.constant 3 : i32
      %129 = tpu.dynamic_rotate %arg5 by %c3_i32 dim 0 : vector<8x128xf32>, i32 -> vector<8x128xf32>
      %130 = arith.subf %arg5, %129 : vector<8x128xf32>
      %c3_i32_18 = arith.constant 3 : i32
      %131 = tpu.dynamic_rotate %arg6 by %c3_i32_18 dim 0 : vector<8x128xf32>, i32 -> vector<8x128xf32>
      %132 = arith.subf %arg6, %131 : vector<8x128xf32>
      %133 = arith.mulf %125, %130 : vector<8x128xf32>
      %134 = arith.mulf %128, %132 : vector<8x128xf32>
      %135 = arith.subf %133, %134 : vector<8x128xf32>
      %136 = arith.mulf %125, %132 : vector<8x128xf32>
      %137 = arith.mulf %128, %130 : vector<8x128xf32>
      %138 = arith.addf %136, %137 : vector<8x128xf32>
      %c4_i32 = arith.constant 4 : i32
      %139 = tpu.dynamic_rotate %arg5 by %c4_i32 dim 0 : vector<8x128xf32>, i32 -> vector<8x128xf32>
      %140 = arith.subf %arg5, %139 : vector<8x128xf32>
      %c4_i32_19 = arith.constant 4 : i32
      %141 = tpu.dynamic_rotate %arg6 by %c4_i32_19 dim 0 : vector<8x128xf32>, i32 -> vector<8x128xf32>
      %142 = arith.subf %arg6, %141 : vector<8x128xf32>
      %143 = arith.mulf %135, %140 : vector<8x128xf32>
      %144 = arith.mulf %138, %142 : vector<8x128xf32>
      %145 = arith.subf %143, %144 : vector<8x128xf32>
      %146 = arith.mulf %135, %142 : vector<8x128xf32>
      %147 = arith.mulf %138, %140 : vector<8x128xf32>
      %148 = arith.addf %146, %147 : vector<8x128xf32>
      %c5_i32 = arith.constant 5 : i32
      %149 = tpu.dynamic_rotate %arg5 by %c5_i32 dim 0 : vector<8x128xf32>, i32 -> vector<8x128xf32>
      %150 = arith.subf %arg5, %149 : vector<8x128xf32>
      %c5_i32_20 = arith.constant 5 : i32
      %151 = tpu.dynamic_rotate %arg6 by %c5_i32_20 dim 0 : vector<8x128xf32>, i32 -> vector<8x128xf32>
      %152 = arith.subf %arg6, %151 : vector<8x128xf32>
      %153 = arith.mulf %145, %150 : vector<8x128xf32>
      %154 = arith.mulf %148, %152 : vector<8x128xf32>
      %155 = arith.subf %153, %154 : vector<8x128xf32>
      %156 = arith.mulf %145, %152 : vector<8x128xf32>
      %157 = arith.mulf %148, %150 : vector<8x128xf32>
      %158 = arith.addf %156, %157 : vector<8x128xf32>
      %c6_i32 = arith.constant 6 : i32
      %159 = tpu.dynamic_rotate %arg5 by %c6_i32 dim 0 : vector<8x128xf32>, i32 -> vector<8x128xf32>
      %160 = arith.subf %arg5, %159 : vector<8x128xf32>
      %c6_i32_21 = arith.constant 6 : i32
      %161 = tpu.dynamic_rotate %arg6 by %c6_i32_21 dim 0 : vector<8x128xf32>, i32 -> vector<8x128xf32>
      %162 = arith.subf %arg6, %161 : vector<8x128xf32>
      %163 = arith.mulf %155, %160 : vector<8x128xf32>
      %164 = arith.mulf %158, %162 : vector<8x128xf32>
      %165 = arith.subf %163, %164 : vector<8x128xf32>
      %166 = arith.mulf %155, %162 : vector<8x128xf32>
      %167 = arith.mulf %158, %160 : vector<8x128xf32>
      %168 = arith.addf %166, %167 : vector<8x128xf32>
      %c7_i32 = arith.constant 7 : i32
      %169 = tpu.dynamic_rotate %arg5 by %c7_i32 dim 0 : vector<8x128xf32>, i32 -> vector<8x128xf32>
      %170 = arith.subf %arg5, %169 : vector<8x128xf32>
      %c7_i32_22 = arith.constant 7 : i32
      %171 = tpu.dynamic_rotate %arg6 by %c7_i32_22 dim 0 : vector<8x128xf32>, i32 -> vector<8x128xf32>
      %172 = arith.subf %arg6, %171 : vector<8x128xf32>
      %173 = arith.mulf %165, %170 : vector<8x128xf32>
      %174 = arith.mulf %168, %172 : vector<8x128xf32>
      %175 = arith.subf %173, %174 : vector<8x128xf32>
      %176 = arith.mulf %165, %172 : vector<8x128xf32>
      %177 = arith.mulf %168, %170 : vector<8x128xf32>
      %178 = arith.addf %176, %177 : vector<8x128xf32>
      %179 = arith.mulf %175, %175 : vector<8x128xf32>
      %180 = arith.mulf %178, %178 : vector<8x128xf32>
      %181 = arith.addf %179, %180 : vector<8x128xf32>
      %182 = tpu.reciprocal %181 {approx = true} : vector<8x128xf32> -> vector<8x128xf32>
      %183 = arith.mulf %103, %175 : vector<8x128xf32>
      %184 = arith.mulf %106, %178 : vector<8x128xf32>
      %185 = arith.addf %183, %184 : vector<8x128xf32>
      %186 = arith.mulf %185, %182 : vector<8x128xf32>
      %187 = arith.mulf %106, %175 : vector<8x128xf32>
      %188 = arith.mulf %103, %178 : vector<8x128xf32>
      %189 = arith.subf %187, %188 : vector<8x128xf32>
      %190 = arith.mulf %189, %182 : vector<8x128xf32>
      %191 = arith.subf %arg5, %186 : vector<8x128xf32>
      %192 = arith.subf %arg6, %190 : vector<8x128xf32>
      %cst_23 = arith.constant 1.000000e+00 : f32
      %193 = vector.broadcast %cst_23 : f32 to vector<8x128xf32>
      %cst_24 = arith.constant 0.000000e+00 : f32
      %194 = vector.broadcast %cst_24 : f32 to vector<8x128xf32>
      %195 = arith.mulf %193, %191 : vector<8x128xf32>
      %196 = arith.mulf %194, %192 : vector<8x128xf32>
      %197 = arith.subf %195, %196 : vector<8x128xf32>
      %198 = arith.addf %197, %9 : vector<8x128xf32>
      %199 = arith.mulf %193, %192 : vector<8x128xf32>
      %200 = arith.mulf %194, %191 : vector<8x128xf32>
      %201 = arith.addf %199, %200 : vector<8x128xf32>
      %202 = arith.mulf %198, %191 : vector<8x128xf32>
      %203 = arith.mulf %201, %192 : vector<8x128xf32>
      %204 = arith.subf %202, %203 : vector<8x128xf32>
      %205 = arith.addf %204, %12 : vector<8x128xf32>
      %206 = arith.mulf %198, %192 : vector<8x128xf32>
      %207 = arith.mulf %201, %191 : vector<8x128xf32>
      %208 = arith.addf %206, %207 : vector<8x128xf32>
      %209 = arith.mulf %205, %191 : vector<8x128xf32>
      %210 = arith.mulf %208, %192 : vector<8x128xf32>
      %211 = arith.subf %209, %210 : vector<8x128xf32>
      %212 = arith.addf %211, %15 : vector<8x128xf32>
      %213 = arith.mulf %205, %192 : vector<8x128xf32>
      %214 = arith.mulf %208, %191 : vector<8x128xf32>
      %215 = arith.addf %213, %214 : vector<8x128xf32>
      %216 = arith.mulf %212, %191 : vector<8x128xf32>
      %217 = arith.mulf %215, %192 : vector<8x128xf32>
      %218 = arith.subf %216, %217 : vector<8x128xf32>
      %219 = arith.addf %218, %18 : vector<8x128xf32>
      %220 = arith.mulf %212, %192 : vector<8x128xf32>
      %221 = arith.mulf %215, %191 : vector<8x128xf32>
      %222 = arith.addf %220, %221 : vector<8x128xf32>
      %223 = arith.mulf %219, %191 : vector<8x128xf32>
      %224 = arith.mulf %222, %192 : vector<8x128xf32>
      %225 = arith.subf %223, %224 : vector<8x128xf32>
      %226 = arith.addf %225, %21 : vector<8x128xf32>
      %227 = arith.mulf %219, %192 : vector<8x128xf32>
      %228 = arith.mulf %222, %191 : vector<8x128xf32>
      %229 = arith.addf %227, %228 : vector<8x128xf32>
      %230 = arith.mulf %226, %191 : vector<8x128xf32>
      %231 = arith.mulf %229, %192 : vector<8x128xf32>
      %232 = arith.subf %230, %231 : vector<8x128xf32>
      %233 = arith.addf %232, %24 : vector<8x128xf32>
      %234 = arith.mulf %226, %192 : vector<8x128xf32>
      %235 = arith.mulf %229, %191 : vector<8x128xf32>
      %236 = arith.addf %234, %235 : vector<8x128xf32>
      %237 = arith.mulf %233, %191 : vector<8x128xf32>
      %238 = arith.mulf %236, %192 : vector<8x128xf32>
      %239 = arith.subf %237, %238 : vector<8x128xf32>
      %240 = arith.addf %239, %27 : vector<8x128xf32>
      %241 = arith.mulf %233, %192 : vector<8x128xf32>
      %242 = arith.mulf %236, %191 : vector<8x128xf32>
      %243 = arith.addf %241, %242 : vector<8x128xf32>
      %244 = arith.mulf %240, %191 : vector<8x128xf32>
      %245 = arith.mulf %243, %192 : vector<8x128xf32>
      %246 = arith.subf %244, %245 : vector<8x128xf32>
      %247 = arith.addf %246, %30 : vector<8x128xf32>
      %248 = arith.mulf %240, %192 : vector<8x128xf32>
      %249 = arith.mulf %243, %191 : vector<8x128xf32>
      %250 = arith.addf %248, %249 : vector<8x128xf32>
      %cst_25 = arith.constant 1.000000e+00 : f32
      %251 = vector.broadcast %cst_25 : f32 to vector<8x128xf32>
      %cst_26 = arith.constant 0.000000e+00 : f32
      %252 = vector.broadcast %cst_26 : f32 to vector<8x128xf32>
      %c1_i32_27 = arith.constant 1 : i32
      %253 = tpu.dynamic_rotate %191 by %c1_i32_27 dim 0 : vector<8x128xf32>, i32 -> vector<8x128xf32>
      %254 = arith.subf %191, %253 : vector<8x128xf32>
      %c1_i32_28 = arith.constant 1 : i32
      %255 = tpu.dynamic_rotate %192 by %c1_i32_28 dim 0 : vector<8x128xf32>, i32 -> vector<8x128xf32>
      %256 = arith.subf %192, %255 : vector<8x128xf32>
      %257 = arith.mulf %251, %254 : vector<8x128xf32>
      %258 = arith.mulf %252, %256 : vector<8x128xf32>
      %259 = arith.subf %257, %258 : vector<8x128xf32>
      %260 = arith.mulf %251, %256 : vector<8x128xf32>
      %261 = arith.mulf %252, %254 : vector<8x128xf32>
      %262 = arith.addf %260, %261 : vector<8x128xf32>
      %c2_i32_29 = arith.constant 2 : i32
      %263 = tpu.dynamic_rotate %191 by %c2_i32_29 dim 0 : vector<8x128xf32>, i32 -> vector<8x128xf32>
      %264 = arith.subf %191, %263 : vector<8x128xf32>
      %c2_i32_30 = arith.constant 2 : i32
      %265 = tpu.dynamic_rotate %192 by %c2_i32_30 dim 0 : vector<8x128xf32>, i32 -> vector<8x128xf32>
      %266 = arith.subf %192, %265 : vector<8x128xf32>
      %267 = arith.mulf %259, %264 : vector<8x128xf32>
      %268 = arith.mulf %262, %266 : vector<8x128xf32>
      %269 = arith.subf %267, %268 : vector<8x128xf32>
      %270 = arith.mulf %259, %266 : vector<8x128xf32>
      %271 = arith.mulf %262, %264 : vector<8x128xf32>
      %272 = arith.addf %270, %271 : vector<8x128xf32>
      %c3_i32_31 = arith.constant 3 : i32
      %273 = tpu.dynamic_rotate %191 by %c3_i32_31 dim 0 : vector<8x128xf32>, i32 -> vector<8x128xf32>
      %274 = arith.subf %191, %273 : vector<8x128xf32>
      %c3_i32_32 = arith.constant 3 : i32
      %275 = tpu.dynamic_rotate %192 by %c3_i32_32 dim 0 : vector<8x128xf32>, i32 -> vector<8x128xf32>
      %276 = arith.subf %192, %275 : vector<8x128xf32>
      %277 = arith.mulf %269, %274 : vector<8x128xf32>
      %278 = arith.mulf %272, %276 : vector<8x128xf32>
      %279 = arith.subf %277, %278 : vector<8x128xf32>
      %280 = arith.mulf %269, %276 : vector<8x128xf32>
      %281 = arith.mulf %272, %274 : vector<8x128xf32>
      %282 = arith.addf %280, %281 : vector<8x128xf32>
      %c4_i32_33 = arith.constant 4 : i32
      %283 = tpu.dynamic_rotate %191 by %c4_i32_33 dim 0 : vector<8x128xf32>, i32 -> vector<8x128xf32>
      %284 = arith.subf %191, %283 : vector<8x128xf32>
      %c4_i32_34 = arith.constant 4 : i32
      %285 = tpu.dynamic_rotate %192 by %c4_i32_34 dim 0 : vector<8x128xf32>, i32 -> vector<8x128xf32>
      %286 = arith.subf %192, %285 : vector<8x128xf32>
      %287 = arith.mulf %279, %284 : vector<8x128xf32>
      %288 = arith.mulf %282, %286 : vector<8x128xf32>
      %289 = arith.subf %287, %288 : vector<8x128xf32>
      %290 = arith.mulf %279, %286 : vector<8x128xf32>
      %291 = arith.mulf %282, %284 : vector<8x128xf32>
      %292 = arith.addf %290, %291 : vector<8x128xf32>
      %c5_i32_35 = arith.constant 5 : i32
      %293 = tpu.dynamic_rotate %191 by %c5_i32_35 dim 0 : vector<8x128xf32>, i32 -> vector<8x128xf32>
      %294 = arith.subf %191, %293 : vector<8x128xf32>
      %c5_i32_36 = arith.constant 5 : i32
      %295 = tpu.dynamic_rotate %192 by %c5_i32_36 dim 0 : vector<8x128xf32>, i32 -> vector<8x128xf32>
      %296 = arith.subf %192, %295 : vector<8x128xf32>
      %297 = arith.mulf %289, %294 : vector<8x128xf32>
      %298 = arith.mulf %292, %296 : vector<8x128xf32>
      %299 = arith.subf %297, %298 : vector<8x128xf32>
      %300 = arith.mulf %289, %296 : vector<8x128xf32>
      %301 = arith.mulf %292, %294 : vector<8x128xf32>
      %302 = arith.addf %300, %301 : vector<8x128xf32>
      %c6_i32_37 = arith.constant 6 : i32
      %303 = tpu.dynamic_rotate %191 by %c6_i32_37 dim 0 : vector<8x128xf32>, i32 -> vector<8x128xf32>
      %304 = arith.subf %191, %303 : vector<8x128xf32>
      %c6_i32_38 = arith.constant 6 : i32
      %305 = tpu.dynamic_rotate %192 by %c6_i32_38 dim 0 : vector<8x128xf32>, i32 -> vector<8x128xf32>
      %306 = arith.subf %192, %305 : vector<8x128xf32>
      %307 = arith.mulf %299, %304 : vector<8x128xf32>
      %308 = arith.mulf %302, %306 : vector<8x128xf32>
      %309 = arith.subf %307, %308 : vector<8x128xf32>
      %310 = arith.mulf %299, %306 : vector<8x128xf32>
      %311 = arith.mulf %302, %304 : vector<8x128xf32>
      %312 = arith.addf %310, %311 : vector<8x128xf32>
      %c7_i32_39 = arith.constant 7 : i32
      %313 = tpu.dynamic_rotate %191 by %c7_i32_39 dim 0 : vector<8x128xf32>, i32 -> vector<8x128xf32>
      %314 = arith.subf %191, %313 : vector<8x128xf32>
      %c7_i32_40 = arith.constant 7 : i32
      %315 = tpu.dynamic_rotate %192 by %c7_i32_40 dim 0 : vector<8x128xf32>, i32 -> vector<8x128xf32>
      %316 = arith.subf %192, %315 : vector<8x128xf32>
      %317 = arith.mulf %309, %314 : vector<8x128xf32>
      %318 = arith.mulf %312, %316 : vector<8x128xf32>
      %319 = arith.subf %317, %318 : vector<8x128xf32>
      %320 = arith.mulf %309, %316 : vector<8x128xf32>
      %321 = arith.mulf %312, %314 : vector<8x128xf32>
      %322 = arith.addf %320, %321 : vector<8x128xf32>
      %323 = arith.mulf %319, %319 : vector<8x128xf32>
      %324 = arith.mulf %322, %322 : vector<8x128xf32>
      %325 = arith.addf %323, %324 : vector<8x128xf32>
      %326 = tpu.reciprocal %325 {approx = true} : vector<8x128xf32> -> vector<8x128xf32>
      %327 = arith.mulf %247, %319 : vector<8x128xf32>
      %328 = arith.mulf %250, %322 : vector<8x128xf32>
      %329 = arith.addf %327, %328 : vector<8x128xf32>
      %330 = arith.mulf %329, %326 : vector<8x128xf32>
      %331 = arith.mulf %250, %319 : vector<8x128xf32>
      %332 = arith.mulf %247, %322 : vector<8x128xf32>
      %333 = arith.subf %331, %332 : vector<8x128xf32>
      %334 = arith.mulf %333, %326 : vector<8x128xf32>
      %335 = arith.subf %191, %330 : vector<8x128xf32>
      %336 = arith.subf %192, %334 : vector<8x128xf32>
      %cst_41 = arith.constant 1.000000e+00 : f32
      %337 = vector.broadcast %cst_41 : f32 to vector<8x128xf32>
      %cst_42 = arith.constant 0.000000e+00 : f32
      %338 = vector.broadcast %cst_42 : f32 to vector<8x128xf32>
      %339 = arith.mulf %337, %335 : vector<8x128xf32>
      %340 = arith.mulf %338, %336 : vector<8x128xf32>
      %341 = arith.subf %339, %340 : vector<8x128xf32>
      %342 = arith.addf %341, %9 : vector<8x128xf32>
      %343 = arith.mulf %337, %336 : vector<8x128xf32>
      %344 = arith.mulf %338, %335 : vector<8x128xf32>
      %345 = arith.addf %343, %344 : vector<8x128xf32>
      %346 = arith.mulf %342, %335 : vector<8x128xf32>
      %347 = arith.mulf %345, %336 : vector<8x128xf32>
      %348 = arith.subf %346, %347 : vector<8x128xf32>
      %349 = arith.addf %348, %12 : vector<8x128xf32>
      %350 = arith.mulf %342, %336 : vector<8x128xf32>
      %351 = arith.mulf %345, %335 : vector<8x128xf32>
      %352 = arith.addf %350, %351 : vector<8x128xf32>
      %353 = arith.mulf %349, %335 : vector<8x128xf32>
      %354 = arith.mulf %352, %336 : vector<8x128xf32>
      %355 = arith.subf %353, %354 : vector<8x128xf32>
      %356 = arith.addf %355, %15 : vector<8x128xf32>
      %357 = arith.mulf %349, %336 : vector<8x128xf32>
      %358 = arith.mulf %352, %335 : vector<8x128xf32>
      %359 = arith.addf %357, %358 : vector<8x128xf32>
      %360 = arith.mulf %356, %335 : vector<8x128xf32>
      %361 = arith.mulf %359, %336 : vector<8x128xf32>
      %362 = arith.subf %360, %361 : vector<8x128xf32>
      %363 = arith.addf %362, %18 : vector<8x128xf32>
      %364 = arith.mulf %356, %336 : vector<8x128xf32>
      %365 = arith.mulf %359, %335 : vector<8x128xf32>
      %366 = arith.addf %364, %365 : vector<8x128xf32>
      %367 = arith.mulf %363, %335 : vector<8x128xf32>
      %368 = arith.mulf %366, %336 : vector<8x128xf32>
      %369 = arith.subf %367, %368 : vector<8x128xf32>
      %370 = arith.addf %369, %21 : vector<8x128xf32>
      %371 = arith.mulf %363, %336 : vector<8x128xf32>
      %372 = arith.mulf %366, %335 : vector<8x128xf32>
      %373 = arith.addf %371, %372 : vector<8x128xf32>
      %374 = arith.mulf %370, %335 : vector<8x128xf32>
      %375 = arith.mulf %373, %336 : vector<8x128xf32>
      %376 = arith.subf %374, %375 : vector<8x128xf32>
      %377 = arith.addf %376, %24 : vector<8x128xf32>
      %378 = arith.mulf %370, %336 : vector<8x128xf32>
      %379 = arith.mulf %373, %335 : vector<8x128xf32>
      %380 = arith.addf %378, %379 : vector<8x128xf32>
      %381 = arith.mulf %377, %335 : vector<8x128xf32>
      %382 = arith.mulf %380, %336 : vector<8x128xf32>
      %383 = arith.subf %381, %382 : vector<8x128xf32>
      %384 = arith.addf %383, %27 : vector<8x128xf32>
      %385 = arith.mulf %377, %336 : vector<8x128xf32>
      %386 = arith.mulf %380, %335 : vector<8x128xf32>
      %387 = arith.addf %385, %386 : vector<8x128xf32>
      %388 = arith.mulf %384, %335 : vector<8x128xf32>
      %389 = arith.mulf %387, %336 : vector<8x128xf32>
      %390 = arith.subf %388, %389 : vector<8x128xf32>
      %391 = arith.addf %390, %30 : vector<8x128xf32>
      %392 = arith.mulf %384, %336 : vector<8x128xf32>
      %393 = arith.mulf %387, %335 : vector<8x128xf32>
      %394 = arith.addf %392, %393 : vector<8x128xf32>
      %cst_43 = arith.constant 1.000000e+00 : f32
      %395 = vector.broadcast %cst_43 : f32 to vector<8x128xf32>
      %cst_44 = arith.constant 0.000000e+00 : f32
      %396 = vector.broadcast %cst_44 : f32 to vector<8x128xf32>
      %c1_i32_45 = arith.constant 1 : i32
      %397 = tpu.dynamic_rotate %335 by %c1_i32_45 dim 0 : vector<8x128xf32>, i32 -> vector<8x128xf32>
      %398 = arith.subf %335, %397 : vector<8x128xf32>
      %c1_i32_46 = arith.constant 1 : i32
      %399 = tpu.dynamic_rotate %336 by %c1_i32_46 dim 0 : vector<8x128xf32>, i32 -> vector<8x128xf32>
      %400 = arith.subf %336, %399 : vector<8x128xf32>
      %401 = arith.mulf %395, %398 : vector<8x128xf32>
      %402 = arith.mulf %396, %400 : vector<8x128xf32>
      %403 = arith.subf %401, %402 : vector<8x128xf32>
      %404 = arith.mulf %395, %400 : vector<8x128xf32>
      %405 = arith.mulf %396, %398 : vector<8x128xf32>
      %406 = arith.addf %404, %405 : vector<8x128xf32>
      %c2_i32_47 = arith.constant 2 : i32
      %407 = tpu.dynamic_rotate %335 by %c2_i32_47 dim 0 : vector<8x128xf32>, i32 -> vector<8x128xf32>
      %408 = arith.subf %335, %407 : vector<8x128xf32>
      %c2_i32_48 = arith.constant 2 : i32
      %409 = tpu.dynamic_rotate %336 by %c2_i32_48 dim 0 : vector<8x128xf32>, i32 -> vector<8x128xf32>
      %410 = arith.subf %336, %409 : vector<8x128xf32>
      %411 = arith.mulf %403, %408 : vector<8x128xf32>
      %412 = arith.mulf %406, %410 : vector<8x128xf32>
      %413 = arith.subf %411, %412 : vector<8x128xf32>
      %414 = arith.mulf %403, %410 : vector<8x128xf32>
      %415 = arith.mulf %406, %408 : vector<8x128xf32>
      %416 = arith.addf %414, %415 : vector<8x128xf32>
      %c3_i32_49 = arith.constant 3 : i32
      %417 = tpu.dynamic_rotate %335 by %c3_i32_49 dim 0 : vector<8x128xf32>, i32 -> vector<8x128xf32>
      %418 = arith.subf %335, %417 : vector<8x128xf32>
      %c3_i32_50 = arith.constant 3 : i32
      %419 = tpu.dynamic_rotate %336 by %c3_i32_50 dim 0 : vector<8x128xf32>, i32 -> vector<8x128xf32>
      %420 = arith.subf %336, %419 : vector<8x128xf32>
      %421 = arith.mulf %413, %418 : vector<8x128xf32>
      %422 = arith.mulf %416, %420 : vector<8x128xf32>
      %423 = arith.subf %421, %422 : vector<8x128xf32>
      %424 = arith.mulf %413, %420 : vector<8x128xf32>
      %425 = arith.mulf %416, %418 : vector<8x128xf32>
      %426 = arith.addf %424, %425 : vector<8x128xf32>
      %c4_i32_51 = arith.constant 4 : i32
      %427 = tpu.dynamic_rotate %335 by %c4_i32_51 dim 0 : vector<8x128xf32>, i32 -> vector<8x128xf32>
      %428 = arith.subf %335, %427 : vector<8x128xf32>
      %c4_i32_52 = arith.constant 4 : i32
      %429 = tpu.dynamic_rotate %336 by %c4_i32_52 dim 0 : vector<8x128xf32>, i32 -> vector<8x128xf32>
      %430 = arith.subf %336, %429 : vector<8x128xf32>
      %431 = arith.mulf %423, %428 : vector<8x128xf32>
      %432 = arith.mulf %426, %430 : vector<8x128xf32>
      %433 = arith.subf %431, %432 : vector<8x128xf32>
      %434 = arith.mulf %423, %430 : vector<8x128xf32>
      %435 = arith.mulf %426, %428 : vector<8x128xf32>
      %436 = arith.addf %434, %435 : vector<8x128xf32>
      %c5_i32_53 = arith.constant 5 : i32
      %437 = tpu.dynamic_rotate %335 by %c5_i32_53 dim 0 : vector<8x128xf32>, i32 -> vector<8x128xf32>
      %438 = arith.subf %335, %437 : vector<8x128xf32>
      %c5_i32_54 = arith.constant 5 : i32
      %439 = tpu.dynamic_rotate %336 by %c5_i32_54 dim 0 : vector<8x128xf32>, i32 -> vector<8x128xf32>
      %440 = arith.subf %336, %439 : vector<8x128xf32>
      %441 = arith.mulf %433, %438 : vector<8x128xf32>
      %442 = arith.mulf %436, %440 : vector<8x128xf32>
      %443 = arith.subf %441, %442 : vector<8x128xf32>
      %444 = arith.mulf %433, %440 : vector<8x128xf32>
      %445 = arith.mulf %436, %438 : vector<8x128xf32>
      %446 = arith.addf %444, %445 : vector<8x128xf32>
      %c6_i32_55 = arith.constant 6 : i32
      %447 = tpu.dynamic_rotate %335 by %c6_i32_55 dim 0 : vector<8x128xf32>, i32 -> vector<8x128xf32>
      %448 = arith.subf %335, %447 : vector<8x128xf32>
      %c6_i32_56 = arith.constant 6 : i32
      %449 = tpu.dynamic_rotate %336 by %c6_i32_56 dim 0 : vector<8x128xf32>, i32 -> vector<8x128xf32>
      %450 = arith.subf %336, %449 : vector<8x128xf32>
      %451 = arith.mulf %443, %448 : vector<8x128xf32>
      %452 = arith.mulf %446, %450 : vector<8x128xf32>
      %453 = arith.subf %451, %452 : vector<8x128xf32>
      %454 = arith.mulf %443, %450 : vector<8x128xf32>
      %455 = arith.mulf %446, %448 : vector<8x128xf32>
      %456 = arith.addf %454, %455 : vector<8x128xf32>
      %c7_i32_57 = arith.constant 7 : i32
      %457 = tpu.dynamic_rotate %335 by %c7_i32_57 dim 0 : vector<8x128xf32>, i32 -> vector<8x128xf32>
      %458 = arith.subf %335, %457 : vector<8x128xf32>
      %c7_i32_58 = arith.constant 7 : i32
      %459 = tpu.dynamic_rotate %336 by %c7_i32_58 dim 0 : vector<8x128xf32>, i32 -> vector<8x128xf32>
      %460 = arith.subf %336, %459 : vector<8x128xf32>
      %461 = arith.mulf %453, %458 : vector<8x128xf32>
      %462 = arith.mulf %456, %460 : vector<8x128xf32>
      %463 = arith.subf %461, %462 : vector<8x128xf32>
      %464 = arith.mulf %453, %460 : vector<8x128xf32>
      %465 = arith.mulf %456, %458 : vector<8x128xf32>
      %466 = arith.addf %464, %465 : vector<8x128xf32>
      %467 = arith.mulf %463, %463 : vector<8x128xf32>
      %468 = arith.mulf %466, %466 : vector<8x128xf32>
      %469 = arith.addf %467, %468 : vector<8x128xf32>
      %470 = tpu.reciprocal %469 {approx = true} : vector<8x128xf32> -> vector<8x128xf32>
      %471 = arith.mulf %391, %463 : vector<8x128xf32>
      %472 = arith.mulf %394, %466 : vector<8x128xf32>
      %473 = arith.addf %471, %472 : vector<8x128xf32>
      %474 = arith.mulf %473, %470 : vector<8x128xf32>
      %475 = arith.mulf %394, %463 : vector<8x128xf32>
      %476 = arith.mulf %391, %466 : vector<8x128xf32>
      %477 = arith.subf %475, %476 : vector<8x128xf32>
      %478 = arith.mulf %477, %470 : vector<8x128xf32>
      %479 = arith.subf %335, %474 : vector<8x128xf32>
      %480 = arith.subf %336, %478 : vector<8x128xf32>
      %cst_59 = arith.constant 1.000000e+00 : f32
      %481 = vector.broadcast %cst_59 : f32 to vector<8x128xf32>
      %cst_60 = arith.constant 0.000000e+00 : f32
      %482 = vector.broadcast %cst_60 : f32 to vector<8x128xf32>
      %483 = arith.mulf %481, %479 : vector<8x128xf32>
      %484 = arith.mulf %482, %480 : vector<8x128xf32>
      %485 = arith.subf %483, %484 : vector<8x128xf32>
      %486 = arith.addf %485, %9 : vector<8x128xf32>
      %487 = arith.mulf %481, %480 : vector<8x128xf32>
      %488 = arith.mulf %482, %479 : vector<8x128xf32>
      %489 = arith.addf %487, %488 : vector<8x128xf32>
      %490 = arith.mulf %486, %479 : vector<8x128xf32>
      %491 = arith.mulf %489, %480 : vector<8x128xf32>
      %492 = arith.subf %490, %491 : vector<8x128xf32>
      %493 = arith.addf %492, %12 : vector<8x128xf32>
      %494 = arith.mulf %486, %480 : vector<8x128xf32>
      %495 = arith.mulf %489, %479 : vector<8x128xf32>
      %496 = arith.addf %494, %495 : vector<8x128xf32>
      %497 = arith.mulf %493, %479 : vector<8x128xf32>
      %498 = arith.mulf %496, %480 : vector<8x128xf32>
      %499 = arith.subf %497, %498 : vector<8x128xf32>
      %500 = arith.addf %499, %15 : vector<8x128xf32>
      %501 = arith.mulf %493, %480 : vector<8x128xf32>
      %502 = arith.mulf %496, %479 : vector<8x128xf32>
      %503 = arith.addf %501, %502 : vector<8x128xf32>
      %504 = arith.mulf %500, %479 : vector<8x128xf32>
      %505 = arith.mulf %503, %480 : vector<8x128xf32>
      %506 = arith.subf %504, %505 : vector<8x128xf32>
      %507 = arith.addf %506, %18 : vector<8x128xf32>
      %508 = arith.mulf %500, %480 : vector<8x128xf32>
      %509 = arith.mulf %503, %479 : vector<8x128xf32>
      %510 = arith.addf %508, %509 : vector<8x128xf32>
      %511 = arith.mulf %507, %479 : vector<8x128xf32>
      %512 = arith.mulf %510, %480 : vector<8x128xf32>
      %513 = arith.subf %511, %512 : vector<8x128xf32>
      %514 = arith.addf %513, %21 : vector<8x128xf32>
      %515 = arith.mulf %507, %480 : vector<8x128xf32>
      %516 = arith.mulf %510, %479 : vector<8x128xf32>
      %517 = arith.addf %515, %516 : vector<8x128xf32>
      %518 = arith.mulf %514, %479 : vector<8x128xf32>
      %519 = arith.mulf %517, %480 : vector<8x128xf32>
      %520 = arith.subf %518, %519 : vector<8x128xf32>
      %521 = arith.addf %520, %24 : vector<8x128xf32>
      %522 = arith.mulf %514, %480 : vector<8x128xf32>
      %523 = arith.mulf %517, %479 : vector<8x128xf32>
      %524 = arith.addf %522, %523 : vector<8x128xf32>
      %525 = arith.mulf %521, %479 : vector<8x128xf32>
      %526 = arith.mulf %524, %480 : vector<8x128xf32>
      %527 = arith.subf %525, %526 : vector<8x128xf32>
      %528 = arith.addf %527, %27 : vector<8x128xf32>
      %529 = arith.mulf %521, %480 : vector<8x128xf32>
      %530 = arith.mulf %524, %479 : vector<8x128xf32>
      %531 = arith.addf %529, %530 : vector<8x128xf32>
      %532 = arith.mulf %528, %479 : vector<8x128xf32>
      %533 = arith.mulf %531, %480 : vector<8x128xf32>
      %534 = arith.subf %532, %533 : vector<8x128xf32>
      %535 = arith.addf %534, %30 : vector<8x128xf32>
      %536 = arith.mulf %528, %480 : vector<8x128xf32>
      %537 = arith.mulf %531, %479 : vector<8x128xf32>
      %538 = arith.addf %536, %537 : vector<8x128xf32>
      %cst_61 = arith.constant 1.000000e+00 : f32
      %539 = vector.broadcast %cst_61 : f32 to vector<8x128xf32>
      %cst_62 = arith.constant 0.000000e+00 : f32
      %540 = vector.broadcast %cst_62 : f32 to vector<8x128xf32>
      %c1_i32_63 = arith.constant 1 : i32
      %541 = tpu.dynamic_rotate %479 by %c1_i32_63 dim 0 : vector<8x128xf32>, i32 -> vector<8x128xf32>
      %542 = arith.subf %479, %541 : vector<8x128xf32>
      %c1_i32_64 = arith.constant 1 : i32
      %543 = tpu.dynamic_rotate %480 by %c1_i32_64 dim 0 : vector<8x128xf32>, i32 -> vector<8x128xf32>
      %544 = arith.subf %480, %543 : vector<8x128xf32>
      %545 = arith.mulf %539, %542 : vector<8x128xf32>
      %546 = arith.mulf %540, %544 : vector<8x128xf32>
      %547 = arith.subf %545, %546 : vector<8x128xf32>
      %548 = arith.mulf %539, %544 : vector<8x128xf32>
      %549 = arith.mulf %540, %542 : vector<8x128xf32>
      %550 = arith.addf %548, %549 : vector<8x128xf32>
      %c2_i32_65 = arith.constant 2 : i32
      %551 = tpu.dynamic_rotate %479 by %c2_i32_65 dim 0 : vector<8x128xf32>, i32 -> vector<8x128xf32>
      %552 = arith.subf %479, %551 : vector<8x128xf32>
      %c2_i32_66 = arith.constant 2 : i32
      %553 = tpu.dynamic_rotate %480 by %c2_i32_66 dim 0 : vector<8x128xf32>, i32 -> vector<8x128xf32>
      %554 = arith.subf %480, %553 : vector<8x128xf32>
      %555 = arith.mulf %547, %552 : vector<8x128xf32>
      %556 = arith.mulf %550, %554 : vector<8x128xf32>
      %557 = arith.subf %555, %556 : vector<8x128xf32>
      %558 = arith.mulf %547, %554 : vector<8x128xf32>
      %559 = arith.mulf %550, %552 : vector<8x128xf32>
      %560 = arith.addf %558, %559 : vector<8x128xf32>
      %c3_i32_67 = arith.constant 3 : i32
      %561 = tpu.dynamic_rotate %479 by %c3_i32_67 dim 0 : vector<8x128xf32>, i32 -> vector<8x128xf32>
      %562 = arith.subf %479, %561 : vector<8x128xf32>
      %c3_i32_68 = arith.constant 3 : i32
      %563 = tpu.dynamic_rotate %480 by %c3_i32_68 dim 0 : vector<8x128xf32>, i32 -> vector<8x128xf32>
      %564 = arith.subf %480, %563 : vector<8x128xf32>
      %565 = arith.mulf %557, %562 : vector<8x128xf32>
      %566 = arith.mulf %560, %564 : vector<8x128xf32>
      %567 = arith.subf %565, %566 : vector<8x128xf32>
      %568 = arith.mulf %557, %564 : vector<8x128xf32>
      %569 = arith.mulf %560, %562 : vector<8x128xf32>
      %570 = arith.addf %568, %569 : vector<8x128xf32>
      %c4_i32_69 = arith.constant 4 : i32
      %571 = tpu.dynamic_rotate %479 by %c4_i32_69 dim 0 : vector<8x128xf32>, i32 -> vector<8x128xf32>
      %572 = arith.subf %479, %571 : vector<8x128xf32>
      %c4_i32_70 = arith.constant 4 : i32
      %573 = tpu.dynamic_rotate %480 by %c4_i32_70 dim 0 : vector<8x128xf32>, i32 -> vector<8x128xf32>
      %574 = arith.subf %480, %573 : vector<8x128xf32>
      %575 = arith.mulf %567, %572 : vector<8x128xf32>
      %576 = arith.mulf %570, %574 : vector<8x128xf32>
      %577 = arith.subf %575, %576 : vector<8x128xf32>
      %578 = arith.mulf %567, %574 : vector<8x128xf32>
      %579 = arith.mulf %570, %572 : vector<8x128xf32>
      %580 = arith.addf %578, %579 : vector<8x128xf32>
      %c5_i32_71 = arith.constant 5 : i32
      %581 = tpu.dynamic_rotate %479 by %c5_i32_71 dim 0 : vector<8x128xf32>, i32 -> vector<8x128xf32>
      %582 = arith.subf %479, %581 : vector<8x128xf32>
      %c5_i32_72 = arith.constant 5 : i32
      %583 = tpu.dynamic_rotate %480 by %c5_i32_72 dim 0 : vector<8x128xf32>, i32 -> vector<8x128xf32>
      %584 = arith.subf %480, %583 : vector<8x128xf32>
      %585 = arith.mulf %577, %582 : vector<8x128xf32>
      %586 = arith.mulf %580, %584 : vector<8x128xf32>
      %587 = arith.subf %585, %586 : vector<8x128xf32>
      %588 = arith.mulf %577, %584 : vector<8x128xf32>
      %589 = arith.mulf %580, %582 : vector<8x128xf32>
      %590 = arith.addf %588, %589 : vector<8x128xf32>
      %c6_i32_73 = arith.constant 6 : i32
      %591 = tpu.dynamic_rotate %479 by %c6_i32_73 dim 0 : vector<8x128xf32>, i32 -> vector<8x128xf32>
      %592 = arith.subf %479, %591 : vector<8x128xf32>
      %c6_i32_74 = arith.constant 6 : i32
      %593 = tpu.dynamic_rotate %480 by %c6_i32_74 dim 0 : vector<8x128xf32>, i32 -> vector<8x128xf32>
      %594 = arith.subf %480, %593 : vector<8x128xf32>
      %595 = arith.mulf %587, %592 : vector<8x128xf32>
      %596 = arith.mulf %590, %594 : vector<8x128xf32>
      %597 = arith.subf %595, %596 : vector<8x128xf32>
      %598 = arith.mulf %587, %594 : vector<8x128xf32>
      %599 = arith.mulf %590, %592 : vector<8x128xf32>
      %600 = arith.addf %598, %599 : vector<8x128xf32>
      %c7_i32_75 = arith.constant 7 : i32
      %601 = tpu.dynamic_rotate %479 by %c7_i32_75 dim 0 : vector<8x128xf32>, i32 -> vector<8x128xf32>
      %602 = arith.subf %479, %601 : vector<8x128xf32>
      %c7_i32_76 = arith.constant 7 : i32
      %603 = tpu.dynamic_rotate %480 by %c7_i32_76 dim 0 : vector<8x128xf32>, i32 -> vector<8x128xf32>
      %604 = arith.subf %480, %603 : vector<8x128xf32>
      %605 = arith.mulf %597, %602 : vector<8x128xf32>
      %606 = arith.mulf %600, %604 : vector<8x128xf32>
      %607 = arith.subf %605, %606 : vector<8x128xf32>
      %608 = arith.mulf %597, %604 : vector<8x128xf32>
      %609 = arith.mulf %600, %602 : vector<8x128xf32>
      %610 = arith.addf %608, %609 : vector<8x128xf32>
      %611 = arith.mulf %607, %607 : vector<8x128xf32>
      %612 = arith.mulf %610, %610 : vector<8x128xf32>
      %613 = arith.addf %611, %612 : vector<8x128xf32>
      %614 = tpu.reciprocal %613 {approx = true} : vector<8x128xf32> -> vector<8x128xf32>
      %615 = arith.mulf %535, %607 : vector<8x128xf32>
      %616 = arith.mulf %538, %610 : vector<8x128xf32>
      %617 = arith.addf %615, %616 : vector<8x128xf32>
      %618 = arith.mulf %617, %614 : vector<8x128xf32>
      %619 = arith.mulf %538, %607 : vector<8x128xf32>
      %620 = arith.mulf %535, %610 : vector<8x128xf32>
      %621 = arith.subf %619, %620 : vector<8x128xf32>
      %622 = arith.mulf %621, %614 : vector<8x128xf32>
      %623 = arith.subf %479, %618 : vector<8x128xf32>
      %624 = arith.subf %480, %622 : vector<8x128xf32>
      %cst_77 = arith.constant 1.000000e+00 : f32
      %625 = vector.broadcast %cst_77 : f32 to vector<8x128xf32>
      %cst_78 = arith.constant 0.000000e+00 : f32
      %626 = vector.broadcast %cst_78 : f32 to vector<8x128xf32>
      %627 = arith.mulf %625, %623 : vector<8x128xf32>
      %628 = arith.mulf %626, %624 : vector<8x128xf32>
      %629 = arith.subf %627, %628 : vector<8x128xf32>
      %630 = arith.addf %629, %9 : vector<8x128xf32>
      %631 = arith.mulf %625, %624 : vector<8x128xf32>
      %632 = arith.mulf %626, %623 : vector<8x128xf32>
      %633 = arith.addf %631, %632 : vector<8x128xf32>
      %634 = arith.mulf %630, %623 : vector<8x128xf32>
      %635 = arith.mulf %633, %624 : vector<8x128xf32>
      %636 = arith.subf %634, %635 : vector<8x128xf32>
      %637 = arith.addf %636, %12 : vector<8x128xf32>
      %638 = arith.mulf %630, %624 : vector<8x128xf32>
      %639 = arith.mulf %633, %623 : vector<8x128xf32>
      %640 = arith.addf %638, %639 : vector<8x128xf32>
      %641 = arith.mulf %637, %623 : vector<8x128xf32>
      %642 = arith.mulf %640, %624 : vector<8x128xf32>
      %643 = arith.subf %641, %642 : vector<8x128xf32>
      %644 = arith.addf %643, %15 : vector<8x128xf32>
      %645 = arith.mulf %637, %624 : vector<8x128xf32>
      %646 = arith.mulf %640, %623 : vector<8x128xf32>
      %647 = arith.addf %645, %646 : vector<8x128xf32>
      %648 = arith.mulf %644, %623 : vector<8x128xf32>
      %649 = arith.mulf %647, %624 : vector<8x128xf32>
      %650 = arith.subf %648, %649 : vector<8x128xf32>
      %651 = arith.addf %650, %18 : vector<8x128xf32>
      %652 = arith.mulf %644, %624 : vector<8x128xf32>
      %653 = arith.mulf %647, %623 : vector<8x128xf32>
      %654 = arith.addf %652, %653 : vector<8x128xf32>
      %655 = arith.mulf %651, %623 : vector<8x128xf32>
      %656 = arith.mulf %654, %624 : vector<8x128xf32>
      %657 = arith.subf %655, %656 : vector<8x128xf32>
      %658 = arith.addf %657, %21 : vector<8x128xf32>
      %659 = arith.mulf %651, %624 : vector<8x128xf32>
      %660 = arith.mulf %654, %623 : vector<8x128xf32>
      %661 = arith.addf %659, %660 : vector<8x128xf32>
      %662 = arith.mulf %658, %623 : vector<8x128xf32>
      %663 = arith.mulf %661, %624 : vector<8x128xf32>
      %664 = arith.subf %662, %663 : vector<8x128xf32>
      %665 = arith.addf %664, %24 : vector<8x128xf32>
      %666 = arith.mulf %658, %624 : vector<8x128xf32>
      %667 = arith.mulf %661, %623 : vector<8x128xf32>
      %668 = arith.addf %666, %667 : vector<8x128xf32>
      %669 = arith.mulf %665, %623 : vector<8x128xf32>
      %670 = arith.mulf %668, %624 : vector<8x128xf32>
      %671 = arith.subf %669, %670 : vector<8x128xf32>
      %672 = arith.addf %671, %27 : vector<8x128xf32>
      %673 = arith.mulf %665, %624 : vector<8x128xf32>
      %674 = arith.mulf %668, %623 : vector<8x128xf32>
      %675 = arith.addf %673, %674 : vector<8x128xf32>
      %676 = arith.mulf %672, %623 : vector<8x128xf32>
      %677 = arith.mulf %675, %624 : vector<8x128xf32>
      %678 = arith.subf %676, %677 : vector<8x128xf32>
      %679 = arith.addf %678, %30 : vector<8x128xf32>
      %680 = arith.mulf %672, %624 : vector<8x128xf32>
      %681 = arith.mulf %675, %623 : vector<8x128xf32>
      %682 = arith.addf %680, %681 : vector<8x128xf32>
      %cst_79 = arith.constant 1.000000e+00 : f32
      %683 = vector.broadcast %cst_79 : f32 to vector<8x128xf32>
      %cst_80 = arith.constant 0.000000e+00 : f32
      %684 = vector.broadcast %cst_80 : f32 to vector<8x128xf32>
      %c1_i32_81 = arith.constant 1 : i32
      %685 = tpu.dynamic_rotate %623 by %c1_i32_81 dim 0 : vector<8x128xf32>, i32 -> vector<8x128xf32>
      %686 = arith.subf %623, %685 : vector<8x128xf32>
      %c1_i32_82 = arith.constant 1 : i32
      %687 = tpu.dynamic_rotate %624 by %c1_i32_82 dim 0 : vector<8x128xf32>, i32 -> vector<8x128xf32>
      %688 = arith.subf %624, %687 : vector<8x128xf32>
      %689 = arith.mulf %683, %686 : vector<8x128xf32>
      %690 = arith.mulf %684, %688 : vector<8x128xf32>
      %691 = arith.subf %689, %690 : vector<8x128xf32>
      %692 = arith.mulf %683, %688 : vector<8x128xf32>
      %693 = arith.mulf %684, %686 : vector<8x128xf32>
      %694 = arith.addf %692, %693 : vector<8x128xf32>
      %c2_i32_83 = arith.constant 2 : i32
      %695 = tpu.dynamic_rotate %623 by %c2_i32_83 dim 0 : vector<8x128xf32>, i32 -> vector<8x128xf32>
      %696 = arith.subf %623, %695 : vector<8x128xf32>
      %c2_i32_84 = arith.constant 2 : i32
      %697 = tpu.dynamic_rotate %624 by %c2_i32_84 dim 0 : vector<8x128xf32>, i32 -> vector<8x128xf32>
      %698 = arith.subf %624, %697 : vector<8x128xf32>
      %699 = arith.mulf %691, %696 : vector<8x128xf32>
      %700 = arith.mulf %694, %698 : vector<8x128xf32>
      %701 = arith.subf %699, %700 : vector<8x128xf32>
      %702 = arith.mulf %691, %698 : vector<8x128xf32>
      %703 = arith.mulf %694, %696 : vector<8x128xf32>
      %704 = arith.addf %702, %703 : vector<8x128xf32>
      %c3_i32_85 = arith.constant 3 : i32
      %705 = tpu.dynamic_rotate %623 by %c3_i32_85 dim 0 : vector<8x128xf32>, i32 -> vector<8x128xf32>
      %706 = arith.subf %623, %705 : vector<8x128xf32>
      %c3_i32_86 = arith.constant 3 : i32
      %707 = tpu.dynamic_rotate %624 by %c3_i32_86 dim 0 : vector<8x128xf32>, i32 -> vector<8x128xf32>
      %708 = arith.subf %624, %707 : vector<8x128xf32>
      %709 = arith.mulf %701, %706 : vector<8x128xf32>
      %710 = arith.mulf %704, %708 : vector<8x128xf32>
      %711 = arith.subf %709, %710 : vector<8x128xf32>
      %712 = arith.mulf %701, %708 : vector<8x128xf32>
      %713 = arith.mulf %704, %706 : vector<8x128xf32>
      %714 = arith.addf %712, %713 : vector<8x128xf32>
      %c4_i32_87 = arith.constant 4 : i32
      %715 = tpu.dynamic_rotate %623 by %c4_i32_87 dim 0 : vector<8x128xf32>, i32 -> vector<8x128xf32>
      %716 = arith.subf %623, %715 : vector<8x128xf32>
      %c4_i32_88 = arith.constant 4 : i32
      %717 = tpu.dynamic_rotate %624 by %c4_i32_88 dim 0 : vector<8x128xf32>, i32 -> vector<8x128xf32>
      %718 = arith.subf %624, %717 : vector<8x128xf32>
      %719 = arith.mulf %711, %716 : vector<8x128xf32>
      %720 = arith.mulf %714, %718 : vector<8x128xf32>
      %721 = arith.subf %719, %720 : vector<8x128xf32>
      %722 = arith.mulf %711, %718 : vector<8x128xf32>
      %723 = arith.mulf %714, %716 : vector<8x128xf32>
      %724 = arith.addf %722, %723 : vector<8x128xf32>
      %c5_i32_89 = arith.constant 5 : i32
      %725 = tpu.dynamic_rotate %623 by %c5_i32_89 dim 0 : vector<8x128xf32>, i32 -> vector<8x128xf32>
      %726 = arith.subf %623, %725 : vector<8x128xf32>
      %c5_i32_90 = arith.constant 5 : i32
      %727 = tpu.dynamic_rotate %624 by %c5_i32_90 dim 0 : vector<8x128xf32>, i32 -> vector<8x128xf32>
      %728 = arith.subf %624, %727 : vector<8x128xf32>
      %729 = arith.mulf %721, %726 : vector<8x128xf32>
      %730 = arith.mulf %724, %728 : vector<8x128xf32>
      %731 = arith.subf %729, %730 : vector<8x128xf32>
      %732 = arith.mulf %721, %728 : vector<8x128xf32>
      %733 = arith.mulf %724, %726 : vector<8x128xf32>
      %734 = arith.addf %732, %733 : vector<8x128xf32>
      %c6_i32_91 = arith.constant 6 : i32
      %735 = tpu.dynamic_rotate %623 by %c6_i32_91 dim 0 : vector<8x128xf32>, i32 -> vector<8x128xf32>
      %736 = arith.subf %623, %735 : vector<8x128xf32>
      %c6_i32_92 = arith.constant 6 : i32
      %737 = tpu.dynamic_rotate %624 by %c6_i32_92 dim 0 : vector<8x128xf32>, i32 -> vector<8x128xf32>
      %738 = arith.subf %624, %737 : vector<8x128xf32>
      %739 = arith.mulf %731, %736 : vector<8x128xf32>
      %740 = arith.mulf %734, %738 : vector<8x128xf32>
      %741 = arith.subf %739, %740 : vector<8x128xf32>
      %742 = arith.mulf %731, %738 : vector<8x128xf32>
      %743 = arith.mulf %734, %736 : vector<8x128xf32>
      %744 = arith.addf %742, %743 : vector<8x128xf32>
      %c7_i32_93 = arith.constant 7 : i32
      %745 = tpu.dynamic_rotate %623 by %c7_i32_93 dim 0 : vector<8x128xf32>, i32 -> vector<8x128xf32>
      %746 = arith.subf %623, %745 : vector<8x128xf32>
      %c7_i32_94 = arith.constant 7 : i32
      %747 = tpu.dynamic_rotate %624 by %c7_i32_94 dim 0 : vector<8x128xf32>, i32 -> vector<8x128xf32>
      %748 = arith.subf %624, %747 : vector<8x128xf32>
      %749 = arith.mulf %741, %746 : vector<8x128xf32>
      %750 = arith.mulf %744, %748 : vector<8x128xf32>
      %751 = arith.subf %749, %750 : vector<8x128xf32>
      %752 = arith.mulf %741, %748 : vector<8x128xf32>
      %753 = arith.mulf %744, %746 : vector<8x128xf32>
      %754 = arith.addf %752, %753 : vector<8x128xf32>
      %755 = arith.mulf %751, %751 : vector<8x128xf32>
      %756 = arith.mulf %754, %754 : vector<8x128xf32>
      %757 = arith.addf %755, %756 : vector<8x128xf32>
      %758 = tpu.reciprocal %757 {approx = true} : vector<8x128xf32> -> vector<8x128xf32>
      %759 = arith.mulf %679, %751 : vector<8x128xf32>
      %760 = arith.mulf %682, %754 : vector<8x128xf32>
      %761 = arith.addf %759, %760 : vector<8x128xf32>
      %762 = arith.mulf %761, %758 : vector<8x128xf32>
      %763 = arith.mulf %682, %751 : vector<8x128xf32>
      %764 = arith.mulf %679, %754 : vector<8x128xf32>
      %765 = arith.subf %763, %764 : vector<8x128xf32>
      %766 = arith.mulf %765, %758 : vector<8x128xf32>
      %767 = arith.subf %623, %762 : vector<8x128xf32>
      %768 = arith.subf %624, %766 : vector<8x128xf32>
      %cst_95 = arith.constant 1.000000e+00 : f32
      %769 = vector.broadcast %cst_95 : f32 to vector<8x128xf32>
      %cst_96 = arith.constant 0.000000e+00 : f32
      %770 = vector.broadcast %cst_96 : f32 to vector<8x128xf32>
      %771 = arith.mulf %769, %767 : vector<8x128xf32>
      %772 = arith.mulf %770, %768 : vector<8x128xf32>
      %773 = arith.subf %771, %772 : vector<8x128xf32>
      %774 = arith.addf %773, %9 : vector<8x128xf32>
      %775 = arith.mulf %769, %768 : vector<8x128xf32>
      %776 = arith.mulf %770, %767 : vector<8x128xf32>
      %777 = arith.addf %775, %776 : vector<8x128xf32>
      %778 = arith.mulf %774, %767 : vector<8x128xf32>
      %779 = arith.mulf %777, %768 : vector<8x128xf32>
      %780 = arith.subf %778, %779 : vector<8x128xf32>
      %781 = arith.addf %780, %12 : vector<8x128xf32>
      %782 = arith.mulf %774, %768 : vector<8x128xf32>
      %783 = arith.mulf %777, %767 : vector<8x128xf32>
      %784 = arith.addf %782, %783 : vector<8x128xf32>
      %785 = arith.mulf %781, %767 : vector<8x128xf32>
      %786 = arith.mulf %784, %768 : vector<8x128xf32>
      %787 = arith.subf %785, %786 : vector<8x128xf32>
      %788 = arith.addf %787, %15 : vector<8x128xf32>
      %789 = arith.mulf %781, %768 : vector<8x128xf32>
      %790 = arith.mulf %784, %767 : vector<8x128xf32>
      %791 = arith.addf %789, %790 : vector<8x128xf32>
      %792 = arith.mulf %788, %767 : vector<8x128xf32>
      %793 = arith.mulf %791, %768 : vector<8x128xf32>
      %794 = arith.subf %792, %793 : vector<8x128xf32>
      %795 = arith.addf %794, %18 : vector<8x128xf32>
      %796 = arith.mulf %788, %768 : vector<8x128xf32>
      %797 = arith.mulf %791, %767 : vector<8x128xf32>
      %798 = arith.addf %796, %797 : vector<8x128xf32>
      %799 = arith.mulf %795, %767 : vector<8x128xf32>
      %800 = arith.mulf %798, %768 : vector<8x128xf32>
      %801 = arith.subf %799, %800 : vector<8x128xf32>
      %802 = arith.addf %801, %21 : vector<8x128xf32>
      %803 = arith.mulf %795, %768 : vector<8x128xf32>
      %804 = arith.mulf %798, %767 : vector<8x128xf32>
      %805 = arith.addf %803, %804 : vector<8x128xf32>
      %806 = arith.mulf %802, %767 : vector<8x128xf32>
      %807 = arith.mulf %805, %768 : vector<8x128xf32>
      %808 = arith.subf %806, %807 : vector<8x128xf32>
      %809 = arith.addf %808, %24 : vector<8x128xf32>
      %810 = arith.mulf %802, %768 : vector<8x128xf32>
      %811 = arith.mulf %805, %767 : vector<8x128xf32>
      %812 = arith.addf %810, %811 : vector<8x128xf32>
      %813 = arith.mulf %809, %767 : vector<8x128xf32>
      %814 = arith.mulf %812, %768 : vector<8x128xf32>
      %815 = arith.subf %813, %814 : vector<8x128xf32>
      %816 = arith.addf %815, %27 : vector<8x128xf32>
      %817 = arith.mulf %809, %768 : vector<8x128xf32>
      %818 = arith.mulf %812, %767 : vector<8x128xf32>
      %819 = arith.addf %817, %818 : vector<8x128xf32>
      %820 = arith.mulf %816, %767 : vector<8x128xf32>
      %821 = arith.mulf %819, %768 : vector<8x128xf32>
      %822 = arith.subf %820, %821 : vector<8x128xf32>
      %823 = arith.addf %822, %30 : vector<8x128xf32>
      %824 = arith.mulf %816, %768 : vector<8x128xf32>
      %825 = arith.mulf %819, %767 : vector<8x128xf32>
      %826 = arith.addf %824, %825 : vector<8x128xf32>
      %cst_97 = arith.constant 1.000000e+00 : f32
      %827 = vector.broadcast %cst_97 : f32 to vector<8x128xf32>
      %cst_98 = arith.constant 0.000000e+00 : f32
      %828 = vector.broadcast %cst_98 : f32 to vector<8x128xf32>
      %c1_i32_99 = arith.constant 1 : i32
      %829 = tpu.dynamic_rotate %767 by %c1_i32_99 dim 0 : vector<8x128xf32>, i32 -> vector<8x128xf32>
      %830 = arith.subf %767, %829 : vector<8x128xf32>
      %c1_i32_100 = arith.constant 1 : i32
      %831 = tpu.dynamic_rotate %768 by %c1_i32_100 dim 0 : vector<8x128xf32>, i32 -> vector<8x128xf32>
      %832 = arith.subf %768, %831 : vector<8x128xf32>
      %833 = arith.mulf %827, %830 : vector<8x128xf32>
      %834 = arith.mulf %828, %832 : vector<8x128xf32>
      %835 = arith.subf %833, %834 : vector<8x128xf32>
      %836 = arith.mulf %827, %832 : vector<8x128xf32>
      %837 = arith.mulf %828, %830 : vector<8x128xf32>
      %838 = arith.addf %836, %837 : vector<8x128xf32>
      %c2_i32_101 = arith.constant 2 : i32
      %839 = tpu.dynamic_rotate %767 by %c2_i32_101 dim 0 : vector<8x128xf32>, i32 -> vector<8x128xf32>
      %840 = arith.subf %767, %839 : vector<8x128xf32>
      %c2_i32_102 = arith.constant 2 : i32
      %841 = tpu.dynamic_rotate %768 by %c2_i32_102 dim 0 : vector<8x128xf32>, i32 -> vector<8x128xf32>
      %842 = arith.subf %768, %841 : vector<8x128xf32>
      %843 = arith.mulf %835, %840 : vector<8x128xf32>
      %844 = arith.mulf %838, %842 : vector<8x128xf32>
      %845 = arith.subf %843, %844 : vector<8x128xf32>
      %846 = arith.mulf %835, %842 : vector<8x128xf32>
      %847 = arith.mulf %838, %840 : vector<8x128xf32>
      %848 = arith.addf %846, %847 : vector<8x128xf32>
      %c3_i32_103 = arith.constant 3 : i32
      %849 = tpu.dynamic_rotate %767 by %c3_i32_103 dim 0 : vector<8x128xf32>, i32 -> vector<8x128xf32>
      %850 = arith.subf %767, %849 : vector<8x128xf32>
      %c3_i32_104 = arith.constant 3 : i32
      %851 = tpu.dynamic_rotate %768 by %c3_i32_104 dim 0 : vector<8x128xf32>, i32 -> vector<8x128xf32>
      %852 = arith.subf %768, %851 : vector<8x128xf32>
      %853 = arith.mulf %845, %850 : vector<8x128xf32>
      %854 = arith.mulf %848, %852 : vector<8x128xf32>
      %855 = arith.subf %853, %854 : vector<8x128xf32>
      %856 = arith.mulf %845, %852 : vector<8x128xf32>
      %857 = arith.mulf %848, %850 : vector<8x128xf32>
      %858 = arith.addf %856, %857 : vector<8x128xf32>
      %c4_i32_105 = arith.constant 4 : i32
      %859 = tpu.dynamic_rotate %767 by %c4_i32_105 dim 0 : vector<8x128xf32>, i32 -> vector<8x128xf32>
      %860 = arith.subf %767, %859 : vector<8x128xf32>
      %c4_i32_106 = arith.constant 4 : i32
      %861 = tpu.dynamic_rotate %768 by %c4_i32_106 dim 0 : vector<8x128xf32>, i32 -> vector<8x128xf32>
      %862 = arith.subf %768, %861 : vector<8x128xf32>
      %863 = arith.mulf %855, %860 : vector<8x128xf32>
      %864 = arith.mulf %858, %862 : vector<8x128xf32>
      %865 = arith.subf %863, %864 : vector<8x128xf32>
      %866 = arith.mulf %855, %862 : vector<8x128xf32>
      %867 = arith.mulf %858, %860 : vector<8x128xf32>
      %868 = arith.addf %866, %867 : vector<8x128xf32>
      %c5_i32_107 = arith.constant 5 : i32
      %869 = tpu.dynamic_rotate %767 by %c5_i32_107 dim 0 : vector<8x128xf32>, i32 -> vector<8x128xf32>
      %870 = arith.subf %767, %869 : vector<8x128xf32>
      %c5_i32_108 = arith.constant 5 : i32
      %871 = tpu.dynamic_rotate %768 by %c5_i32_108 dim 0 : vector<8x128xf32>, i32 -> vector<8x128xf32>
      %872 = arith.subf %768, %871 : vector<8x128xf32>
      %873 = arith.mulf %865, %870 : vector<8x128xf32>
      %874 = arith.mulf %868, %872 : vector<8x128xf32>
      %875 = arith.subf %873, %874 : vector<8x128xf32>
      %876 = arith.mulf %865, %872 : vector<8x128xf32>
      %877 = arith.mulf %868, %870 : vector<8x128xf32>
      %878 = arith.addf %876, %877 : vector<8x128xf32>
      %c6_i32_109 = arith.constant 6 : i32
      %879 = tpu.dynamic_rotate %767 by %c6_i32_109 dim 0 : vector<8x128xf32>, i32 -> vector<8x128xf32>
      %880 = arith.subf %767, %879 : vector<8x128xf32>
      %c6_i32_110 = arith.constant 6 : i32
      %881 = tpu.dynamic_rotate %768 by %c6_i32_110 dim 0 : vector<8x128xf32>, i32 -> vector<8x128xf32>
      %882 = arith.subf %768, %881 : vector<8x128xf32>
      %883 = arith.mulf %875, %880 : vector<8x128xf32>
      %884 = arith.mulf %878, %882 : vector<8x128xf32>
      %885 = arith.subf %883, %884 : vector<8x128xf32>
      %886 = arith.mulf %875, %882 : vector<8x128xf32>
      %887 = arith.mulf %878, %880 : vector<8x128xf32>
      %888 = arith.addf %886, %887 : vector<8x128xf32>
      %c7_i32_111 = arith.constant 7 : i32
      %889 = tpu.dynamic_rotate %767 by %c7_i32_111 dim 0 : vector<8x128xf32>, i32 -> vector<8x128xf32>
      %890 = arith.subf %767, %889 : vector<8x128xf32>
      %c7_i32_112 = arith.constant 7 : i32
      %891 = tpu.dynamic_rotate %768 by %c7_i32_112 dim 0 : vector<8x128xf32>, i32 -> vector<8x128xf32>
      %892 = arith.subf %768, %891 : vector<8x128xf32>
      %893 = arith.mulf %885, %890 : vector<8x128xf32>
      %894 = arith.mulf %888, %892 : vector<8x128xf32>
      %895 = arith.subf %893, %894 : vector<8x128xf32>
      %896 = arith.mulf %885, %892 : vector<8x128xf32>
      %897 = arith.mulf %888, %890 : vector<8x128xf32>
      %898 = arith.addf %896, %897 : vector<8x128xf32>
      %899 = arith.mulf %895, %895 : vector<8x128xf32>
      %900 = arith.mulf %898, %898 : vector<8x128xf32>
      %901 = arith.addf %899, %900 : vector<8x128xf32>
      %902 = tpu.reciprocal %901 {approx = true} : vector<8x128xf32> -> vector<8x128xf32>
      %903 = arith.mulf %823, %895 : vector<8x128xf32>
      %904 = arith.mulf %826, %898 : vector<8x128xf32>
      %905 = arith.addf %903, %904 : vector<8x128xf32>
      %906 = arith.mulf %905, %902 : vector<8x128xf32>
      %907 = arith.mulf %826, %895 : vector<8x128xf32>
      %908 = arith.mulf %823, %898 : vector<8x128xf32>
      %909 = arith.subf %907, %908 : vector<8x128xf32>
      %910 = arith.mulf %909, %902 : vector<8x128xf32>
      %911 = arith.subf %767, %906 : vector<8x128xf32>
      %912 = arith.subf %768, %910 : vector<8x128xf32>
      %cst_113 = arith.constant 1.000000e+00 : f32
      %913 = vector.broadcast %cst_113 : f32 to vector<8x128xf32>
      %cst_114 = arith.constant 0.000000e+00 : f32
      %914 = vector.broadcast %cst_114 : f32 to vector<8x128xf32>
      %915 = arith.mulf %913, %911 : vector<8x128xf32>
      %916 = arith.mulf %914, %912 : vector<8x128xf32>
      %917 = arith.subf %915, %916 : vector<8x128xf32>
      %918 = arith.addf %917, %9 : vector<8x128xf32>
      %919 = arith.mulf %913, %912 : vector<8x128xf32>
      %920 = arith.mulf %914, %911 : vector<8x128xf32>
      %921 = arith.addf %919, %920 : vector<8x128xf32>
      %922 = arith.mulf %918, %911 : vector<8x128xf32>
      %923 = arith.mulf %921, %912 : vector<8x128xf32>
      %924 = arith.subf %922, %923 : vector<8x128xf32>
      %925 = arith.addf %924, %12 : vector<8x128xf32>
      %926 = arith.mulf %918, %912 : vector<8x128xf32>
      %927 = arith.mulf %921, %911 : vector<8x128xf32>
      %928 = arith.addf %926, %927 : vector<8x128xf32>
      %929 = arith.mulf %925, %911 : vector<8x128xf32>
      %930 = arith.mulf %928, %912 : vector<8x128xf32>
      %931 = arith.subf %929, %930 : vector<8x128xf32>
      %932 = arith.addf %931, %15 : vector<8x128xf32>
      %933 = arith.mulf %925, %912 : vector<8x128xf32>
      %934 = arith.mulf %928, %911 : vector<8x128xf32>
      %935 = arith.addf %933, %934 : vector<8x128xf32>
      %936 = arith.mulf %932, %911 : vector<8x128xf32>
      %937 = arith.mulf %935, %912 : vector<8x128xf32>
      %938 = arith.subf %936, %937 : vector<8x128xf32>
      %939 = arith.addf %938, %18 : vector<8x128xf32>
      %940 = arith.mulf %932, %912 : vector<8x128xf32>
      %941 = arith.mulf %935, %911 : vector<8x128xf32>
      %942 = arith.addf %940, %941 : vector<8x128xf32>
      %943 = arith.mulf %939, %911 : vector<8x128xf32>
      %944 = arith.mulf %942, %912 : vector<8x128xf32>
      %945 = arith.subf %943, %944 : vector<8x128xf32>
      %946 = arith.addf %945, %21 : vector<8x128xf32>
      %947 = arith.mulf %939, %912 : vector<8x128xf32>
      %948 = arith.mulf %942, %911 : vector<8x128xf32>
      %949 = arith.addf %947, %948 : vector<8x128xf32>
      %950 = arith.mulf %946, %911 : vector<8x128xf32>
      %951 = arith.mulf %949, %912 : vector<8x128xf32>
      %952 = arith.subf %950, %951 : vector<8x128xf32>
      %953 = arith.addf %952, %24 : vector<8x128xf32>
      %954 = arith.mulf %946, %912 : vector<8x128xf32>
      %955 = arith.mulf %949, %911 : vector<8x128xf32>
      %956 = arith.addf %954, %955 : vector<8x128xf32>
      %957 = arith.mulf %953, %911 : vector<8x128xf32>
      %958 = arith.mulf %956, %912 : vector<8x128xf32>
      %959 = arith.subf %957, %958 : vector<8x128xf32>
      %960 = arith.addf %959, %27 : vector<8x128xf32>
      %961 = arith.mulf %953, %912 : vector<8x128xf32>
      %962 = arith.mulf %956, %911 : vector<8x128xf32>
      %963 = arith.addf %961, %962 : vector<8x128xf32>
      %964 = arith.mulf %960, %911 : vector<8x128xf32>
      %965 = arith.mulf %963, %912 : vector<8x128xf32>
      %966 = arith.subf %964, %965 : vector<8x128xf32>
      %967 = arith.addf %966, %30 : vector<8x128xf32>
      %968 = arith.mulf %960, %912 : vector<8x128xf32>
      %969 = arith.mulf %963, %911 : vector<8x128xf32>
      %970 = arith.addf %968, %969 : vector<8x128xf32>
      %cst_115 = arith.constant 1.000000e+00 : f32
      %971 = vector.broadcast %cst_115 : f32 to vector<8x128xf32>
      %cst_116 = arith.constant 0.000000e+00 : f32
      %972 = vector.broadcast %cst_116 : f32 to vector<8x128xf32>
      %c1_i32_117 = arith.constant 1 : i32
      %973 = tpu.dynamic_rotate %911 by %c1_i32_117 dim 0 : vector<8x128xf32>, i32 -> vector<8x128xf32>
      %974 = arith.subf %911, %973 : vector<8x128xf32>
      %c1_i32_118 = arith.constant 1 : i32
      %975 = tpu.dynamic_rotate %912 by %c1_i32_118 dim 0 : vector<8x128xf32>, i32 -> vector<8x128xf32>
      %976 = arith.subf %912, %975 : vector<8x128xf32>
      %977 = arith.mulf %971, %974 : vector<8x128xf32>
      %978 = arith.mulf %972, %976 : vector<8x128xf32>
      %979 = arith.subf %977, %978 : vector<8x128xf32>
      %980 = arith.mulf %971, %976 : vector<8x128xf32>
      %981 = arith.mulf %972, %974 : vector<8x128xf32>
      %982 = arith.addf %980, %981 : vector<8x128xf32>
      %c2_i32_119 = arith.constant 2 : i32
      %983 = tpu.dynamic_rotate %911 by %c2_i32_119 dim 0 : vector<8x128xf32>, i32 -> vector<8x128xf32>
      %984 = arith.subf %911, %983 : vector<8x128xf32>
      %c2_i32_120 = arith.constant 2 : i32
      %985 = tpu.dynamic_rotate %912 by %c2_i32_120 dim 0 : vector<8x128xf32>, i32 -> vector<8x128xf32>
      %986 = arith.subf %912, %985 : vector<8x128xf32>
      %987 = arith.mulf %979, %984 : vector<8x128xf32>
      %988 = arith.mulf %982, %986 : vector<8x128xf32>
      %989 = arith.subf %987, %988 : vector<8x128xf32>
      %990 = arith.mulf %979, %986 : vector<8x128xf32>
      %991 = arith.mulf %982, %984 : vector<8x128xf32>
      %992 = arith.addf %990, %991 : vector<8x128xf32>
      %c3_i32_121 = arith.constant 3 : i32
      %993 = tpu.dynamic_rotate %911 by %c3_i32_121 dim 0 : vector<8x128xf32>, i32 -> vector<8x128xf32>
      %994 = arith.subf %911, %993 : vector<8x128xf32>
      %c3_i32_122 = arith.constant 3 : i32
      %995 = tpu.dynamic_rotate %912 by %c3_i32_122 dim 0 : vector<8x128xf32>, i32 -> vector<8x128xf32>
      %996 = arith.subf %912, %995 : vector<8x128xf32>
      %997 = arith.mulf %989, %994 : vector<8x128xf32>
      %998 = arith.mulf %992, %996 : vector<8x128xf32>
      %999 = arith.subf %997, %998 : vector<8x128xf32>
      %1000 = arith.mulf %989, %996 : vector<8x128xf32>
      %1001 = arith.mulf %992, %994 : vector<8x128xf32>
      %1002 = arith.addf %1000, %1001 : vector<8x128xf32>
      %c4_i32_123 = arith.constant 4 : i32
      %1003 = tpu.dynamic_rotate %911 by %c4_i32_123 dim 0 : vector<8x128xf32>, i32 -> vector<8x128xf32>
      %1004 = arith.subf %911, %1003 : vector<8x128xf32>
      %c4_i32_124 = arith.constant 4 : i32
      %1005 = tpu.dynamic_rotate %912 by %c4_i32_124 dim 0 : vector<8x128xf32>, i32 -> vector<8x128xf32>
      %1006 = arith.subf %912, %1005 : vector<8x128xf32>
      %1007 = arith.mulf %999, %1004 : vector<8x128xf32>
      %1008 = arith.mulf %1002, %1006 : vector<8x128xf32>
      %1009 = arith.subf %1007, %1008 : vector<8x128xf32>
      %1010 = arith.mulf %999, %1006 : vector<8x128xf32>
      %1011 = arith.mulf %1002, %1004 : vector<8x128xf32>
      %1012 = arith.addf %1010, %1011 : vector<8x128xf32>
      %c5_i32_125 = arith.constant 5 : i32
      %1013 = tpu.dynamic_rotate %911 by %c5_i32_125 dim 0 : vector<8x128xf32>, i32 -> vector<8x128xf32>
      %1014 = arith.subf %911, %1013 : vector<8x128xf32>
      %c5_i32_126 = arith.constant 5 : i32
      %1015 = tpu.dynamic_rotate %912 by %c5_i32_126 dim 0 : vector<8x128xf32>, i32 -> vector<8x128xf32>
      %1016 = arith.subf %912, %1015 : vector<8x128xf32>
      %1017 = arith.mulf %1009, %1014 : vector<8x128xf32>
      %1018 = arith.mulf %1012, %1016 : vector<8x128xf32>
      %1019 = arith.subf %1017, %1018 : vector<8x128xf32>
      %1020 = arith.mulf %1009, %1016 : vector<8x128xf32>
      %1021 = arith.mulf %1012, %1014 : vector<8x128xf32>
      %1022 = arith.addf %1020, %1021 : vector<8x128xf32>
      %c6_i32_127 = arith.constant 6 : i32
      %1023 = tpu.dynamic_rotate %911 by %c6_i32_127 dim 0 : vector<8x128xf32>, i32 -> vector<8x128xf32>
      %1024 = arith.subf %911, %1023 : vector<8x128xf32>
      %c6_i32_128 = arith.constant 6 : i32
      %1025 = tpu.dynamic_rotate %912 by %c6_i32_128 dim 0 : vector<8x128xf32>, i32 -> vector<8x128xf32>
      %1026 = arith.subf %912, %1025 : vector<8x128xf32>
      %1027 = arith.mulf %1019, %1024 : vector<8x128xf32>
      %1028 = arith.mulf %1022, %1026 : vector<8x128xf32>
      %1029 = arith.subf %1027, %1028 : vector<8x128xf32>
      %1030 = arith.mulf %1019, %1026 : vector<8x128xf32>
      %1031 = arith.mulf %1022, %1024 : vector<8x128xf32>
      %1032 = arith.addf %1030, %1031 : vector<8x128xf32>
      %c7_i32_129 = arith.constant 7 : i32
      %1033 = tpu.dynamic_rotate %911 by %c7_i32_129 dim 0 : vector<8x128xf32>, i32 -> vector<8x128xf32>
      %1034 = arith.subf %911, %1033 : vector<8x128xf32>
      %c7_i32_130 = arith.constant 7 : i32
      %1035 = tpu.dynamic_rotate %912 by %c7_i32_130 dim 0 : vector<8x128xf32>, i32 -> vector<8x128xf32>
      %1036 = arith.subf %912, %1035 : vector<8x128xf32>
      %1037 = arith.mulf %1029, %1034 : vector<8x128xf32>
      %1038 = arith.mulf %1032, %1036 : vector<8x128xf32>
      %1039 = arith.subf %1037, %1038 : vector<8x128xf32>
      %1040 = arith.mulf %1029, %1036 : vector<8x128xf32>
      %1041 = arith.mulf %1032, %1034 : vector<8x128xf32>
      %1042 = arith.addf %1040, %1041 : vector<8x128xf32>
      %1043 = arith.mulf %1039, %1039 : vector<8x128xf32>
      %1044 = arith.mulf %1042, %1042 : vector<8x128xf32>
      %1045 = arith.addf %1043, %1044 : vector<8x128xf32>
      %1046 = tpu.reciprocal %1045 {approx = true} : vector<8x128xf32> -> vector<8x128xf32>
      %1047 = arith.mulf %967, %1039 : vector<8x128xf32>
      %1048 = arith.mulf %970, %1042 : vector<8x128xf32>
      %1049 = arith.addf %1047, %1048 : vector<8x128xf32>
      %1050 = arith.mulf %1049, %1046 : vector<8x128xf32>
      %1051 = arith.mulf %970, %1039 : vector<8x128xf32>
      %1052 = arith.mulf %967, %1042 : vector<8x128xf32>
      %1053 = arith.subf %1051, %1052 : vector<8x128xf32>
      %1054 = arith.mulf %1053, %1046 : vector<8x128xf32>
      %1055 = arith.subf %911, %1050 : vector<8x128xf32>
      %1056 = arith.subf %912, %1054 : vector<8x128xf32>
      %cst_131 = arith.constant 1.000000e+00 : f32
      %1057 = vector.broadcast %cst_131 : f32 to vector<8x128xf32>
      %cst_132 = arith.constant 0.000000e+00 : f32
      %1058 = vector.broadcast %cst_132 : f32 to vector<8x128xf32>
      %1059 = arith.mulf %1057, %1055 : vector<8x128xf32>
      %1060 = arith.mulf %1058, %1056 : vector<8x128xf32>
      %1061 = arith.subf %1059, %1060 : vector<8x128xf32>
      %1062 = arith.addf %1061, %9 : vector<8x128xf32>
      %1063 = arith.mulf %1057, %1056 : vector<8x128xf32>
      %1064 = arith.mulf %1058, %1055 : vector<8x128xf32>
      %1065 = arith.addf %1063, %1064 : vector<8x128xf32>
      %1066 = arith.mulf %1062, %1055 : vector<8x128xf32>
      %1067 = arith.mulf %1065, %1056 : vector<8x128xf32>
      %1068 = arith.subf %1066, %1067 : vector<8x128xf32>
      %1069 = arith.addf %1068, %12 : vector<8x128xf32>
      %1070 = arith.mulf %1062, %1056 : vector<8x128xf32>
      %1071 = arith.mulf %1065, %1055 : vector<8x128xf32>
      %1072 = arith.addf %1070, %1071 : vector<8x128xf32>
      %1073 = arith.mulf %1069, %1055 : vector<8x128xf32>
      %1074 = arith.mulf %1072, %1056 : vector<8x128xf32>
      %1075 = arith.subf %1073, %1074 : vector<8x128xf32>
      %1076 = arith.addf %1075, %15 : vector<8x128xf32>
      %1077 = arith.mulf %1069, %1056 : vector<8x128xf32>
      %1078 = arith.mulf %1072, %1055 : vector<8x128xf32>
      %1079 = arith.addf %1077, %1078 : vector<8x128xf32>
      %1080 = arith.mulf %1076, %1055 : vector<8x128xf32>
      %1081 = arith.mulf %1079, %1056 : vector<8x128xf32>
      %1082 = arith.subf %1080, %1081 : vector<8x128xf32>
      %1083 = arith.addf %1082, %18 : vector<8x128xf32>
      %1084 = arith.mulf %1076, %1056 : vector<8x128xf32>
      %1085 = arith.mulf %1079, %1055 : vector<8x128xf32>
      %1086 = arith.addf %1084, %1085 : vector<8x128xf32>
      %1087 = arith.mulf %1083, %1055 : vector<8x128xf32>
      %1088 = arith.mulf %1086, %1056 : vector<8x128xf32>
      %1089 = arith.subf %1087, %1088 : vector<8x128xf32>
      %1090 = arith.addf %1089, %21 : vector<8x128xf32>
      %1091 = arith.mulf %1083, %1056 : vector<8x128xf32>
      %1092 = arith.mulf %1086, %1055 : vector<8x128xf32>
      %1093 = arith.addf %1091, %1092 : vector<8x128xf32>
      %1094 = arith.mulf %1090, %1055 : vector<8x128xf32>
      %1095 = arith.mulf %1093, %1056 : vector<8x128xf32>
      %1096 = arith.subf %1094, %1095 : vector<8x128xf32>
      %1097 = arith.addf %1096, %24 : vector<8x128xf32>
      %1098 = arith.mulf %1090, %1056 : vector<8x128xf32>
      %1099 = arith.mulf %1093, %1055 : vector<8x128xf32>
      %1100 = arith.addf %1098, %1099 : vector<8x128xf32>
      %1101 = arith.mulf %1097, %1055 : vector<8x128xf32>
      %1102 = arith.mulf %1100, %1056 : vector<8x128xf32>
      %1103 = arith.subf %1101, %1102 : vector<8x128xf32>
      %1104 = arith.addf %1103, %27 : vector<8x128xf32>
      %1105 = arith.mulf %1097, %1056 : vector<8x128xf32>
      %1106 = arith.mulf %1100, %1055 : vector<8x128xf32>
      %1107 = arith.addf %1105, %1106 : vector<8x128xf32>
      %1108 = arith.mulf %1104, %1055 : vector<8x128xf32>
      %1109 = arith.mulf %1107, %1056 : vector<8x128xf32>
      %1110 = arith.subf %1108, %1109 : vector<8x128xf32>
      %1111 = arith.addf %1110, %30 : vector<8x128xf32>
      %1112 = arith.mulf %1104, %1056 : vector<8x128xf32>
      %1113 = arith.mulf %1107, %1055 : vector<8x128xf32>
      %1114 = arith.addf %1112, %1113 : vector<8x128xf32>
      %cst_133 = arith.constant 1.000000e+00 : f32
      %1115 = vector.broadcast %cst_133 : f32 to vector<8x128xf32>
      %cst_134 = arith.constant 0.000000e+00 : f32
      %1116 = vector.broadcast %cst_134 : f32 to vector<8x128xf32>
      %c1_i32_135 = arith.constant 1 : i32
      %1117 = tpu.dynamic_rotate %1055 by %c1_i32_135 dim 0 : vector<8x128xf32>, i32 -> vector<8x128xf32>
      %1118 = arith.subf %1055, %1117 : vector<8x128xf32>
      %c1_i32_136 = arith.constant 1 : i32
      %1119 = tpu.dynamic_rotate %1056 by %c1_i32_136 dim 0 : vector<8x128xf32>, i32 -> vector<8x128xf32>
      %1120 = arith.subf %1056, %1119 : vector<8x128xf32>
      %1121 = arith.mulf %1115, %1118 : vector<8x128xf32>
      %1122 = arith.mulf %1116, %1120 : vector<8x128xf32>
      %1123 = arith.subf %1121, %1122 : vector<8x128xf32>
      %1124 = arith.mulf %1115, %1120 : vector<8x128xf32>
      %1125 = arith.mulf %1116, %1118 : vector<8x128xf32>
      %1126 = arith.addf %1124, %1125 : vector<8x128xf32>
      %c2_i32_137 = arith.constant 2 : i32
      %1127 = tpu.dynamic_rotate %1055 by %c2_i32_137 dim 0 : vector<8x128xf32>, i32 -> vector<8x128xf32>
      %1128 = arith.subf %1055, %1127 : vector<8x128xf32>
      %c2_i32_138 = arith.constant 2 : i32
      %1129 = tpu.dynamic_rotate %1056 by %c2_i32_138 dim 0 : vector<8x128xf32>, i32 -> vector<8x128xf32>
      %1130 = arith.subf %1056, %1129 : vector<8x128xf32>
      %1131 = arith.mulf %1123, %1128 : vector<8x128xf32>
      %1132 = arith.mulf %1126, %1130 : vector<8x128xf32>
      %1133 = arith.subf %1131, %1132 : vector<8x128xf32>
      %1134 = arith.mulf %1123, %1130 : vector<8x128xf32>
      %1135 = arith.mulf %1126, %1128 : vector<8x128xf32>
      %1136 = arith.addf %1134, %1135 : vector<8x128xf32>
      %c3_i32_139 = arith.constant 3 : i32
      %1137 = tpu.dynamic_rotate %1055 by %c3_i32_139 dim 0 : vector<8x128xf32>, i32 -> vector<8x128xf32>
      %1138 = arith.subf %1055, %1137 : vector<8x128xf32>
      %c3_i32_140 = arith.constant 3 : i32
      %1139 = tpu.dynamic_rotate %1056 by %c3_i32_140 dim 0 : vector<8x128xf32>, i32 -> vector<8x128xf32>
      %1140 = arith.subf %1056, %1139 : vector<8x128xf32>
      %1141 = arith.mulf %1133, %1138 : vector<8x128xf32>
      %1142 = arith.mulf %1136, %1140 : vector<8x128xf32>
      %1143 = arith.subf %1141, %1142 : vector<8x128xf32>
      %1144 = arith.mulf %1133, %1140 : vector<8x128xf32>
      %1145 = arith.mulf %1136, %1138 : vector<8x128xf32>
      %1146 = arith.addf %1144, %1145 : vector<8x128xf32>
      %c4_i32_141 = arith.constant 4 : i32
      %1147 = tpu.dynamic_rotate %1055 by %c4_i32_141 dim 0 : vector<8x128xf32>, i32 -> vector<8x128xf32>
      %1148 = arith.subf %1055, %1147 : vector<8x128xf32>
      %c4_i32_142 = arith.constant 4 : i32
      %1149 = tpu.dynamic_rotate %1056 by %c4_i32_142 dim 0 : vector<8x128xf32>, i32 -> vector<8x128xf32>
      %1150 = arith.subf %1056, %1149 : vector<8x128xf32>
      %1151 = arith.mulf %1143, %1148 : vector<8x128xf32>
      %1152 = arith.mulf %1146, %1150 : vector<8x128xf32>
      %1153 = arith.subf %1151, %1152 : vector<8x128xf32>
      %1154 = arith.mulf %1143, %1150 : vector<8x128xf32>
      %1155 = arith.mulf %1146, %1148 : vector<8x128xf32>
      %1156 = arith.addf %1154, %1155 : vector<8x128xf32>
      %c5_i32_143 = arith.constant 5 : i32
      %1157 = tpu.dynamic_rotate %1055 by %c5_i32_143 dim 0 : vector<8x128xf32>, i32 -> vector<8x128xf32>
      %1158 = arith.subf %1055, %1157 : vector<8x128xf32>
      %c5_i32_144 = arith.constant 5 : i32
      %1159 = tpu.dynamic_rotate %1056 by %c5_i32_144 dim 0 : vector<8x128xf32>, i32 -> vector<8x128xf32>
      %1160 = arith.subf %1056, %1159 : vector<8x128xf32>
      %1161 = arith.mulf %1153, %1158 : vector<8x128xf32>
      %1162 = arith.mulf %1156, %1160 : vector<8x128xf32>
      %1163 = arith.subf %1161, %1162 : vector<8x128xf32>
      %1164 = arith.mulf %1153, %1160 : vector<8x128xf32>
      %1165 = arith.mulf %1156, %1158 : vector<8x128xf32>
      %1166 = arith.addf %1164, %1165 : vector<8x128xf32>
      %c6_i32_145 = arith.constant 6 : i32
      %1167 = tpu.dynamic_rotate %1055 by %c6_i32_145 dim 0 : vector<8x128xf32>, i32 -> vector<8x128xf32>
      %1168 = arith.subf %1055, %1167 : vector<8x128xf32>
      %c6_i32_146 = arith.constant 6 : i32
      %1169 = tpu.dynamic_rotate %1056 by %c6_i32_146 dim 0 : vector<8x128xf32>, i32 -> vector<8x128xf32>
      %1170 = arith.subf %1056, %1169 : vector<8x128xf32>
      %1171 = arith.mulf %1163, %1168 : vector<8x128xf32>
      %1172 = arith.mulf %1166, %1170 : vector<8x128xf32>
      %1173 = arith.subf %1171, %1172 : vector<8x128xf32>
      %1174 = arith.mulf %1163, %1170 : vector<8x128xf32>
      %1175 = arith.mulf %1166, %1168 : vector<8x128xf32>
      %1176 = arith.addf %1174, %1175 : vector<8x128xf32>
      %c7_i32_147 = arith.constant 7 : i32
      %1177 = tpu.dynamic_rotate %1055 by %c7_i32_147 dim 0 : vector<8x128xf32>, i32 -> vector<8x128xf32>
      %1178 = arith.subf %1055, %1177 : vector<8x128xf32>
      %c7_i32_148 = arith.constant 7 : i32
      %1179 = tpu.dynamic_rotate %1056 by %c7_i32_148 dim 0 : vector<8x128xf32>, i32 -> vector<8x128xf32>
      %1180 = arith.subf %1056, %1179 : vector<8x128xf32>
      %1181 = arith.mulf %1173, %1178 : vector<8x128xf32>
      %1182 = arith.mulf %1176, %1180 : vector<8x128xf32>
      %1183 = arith.subf %1181, %1182 : vector<8x128xf32>
      %1184 = arith.mulf %1173, %1180 : vector<8x128xf32>
      %1185 = arith.mulf %1176, %1178 : vector<8x128xf32>
      %1186 = arith.addf %1184, %1185 : vector<8x128xf32>
      %1187 = arith.mulf %1183, %1183 : vector<8x128xf32>
      %1188 = arith.mulf %1186, %1186 : vector<8x128xf32>
      %1189 = arith.addf %1187, %1188 : vector<8x128xf32>
      %1190 = tpu.reciprocal %1189 {approx = true} : vector<8x128xf32> -> vector<8x128xf32>
      %1191 = arith.mulf %1111, %1183 : vector<8x128xf32>
      %1192 = arith.mulf %1114, %1186 : vector<8x128xf32>
      %1193 = arith.addf %1191, %1192 : vector<8x128xf32>
      %1194 = arith.mulf %1193, %1190 : vector<8x128xf32>
      %1195 = arith.mulf %1114, %1183 : vector<8x128xf32>
      %1196 = arith.mulf %1111, %1186 : vector<8x128xf32>
      %1197 = arith.subf %1195, %1196 : vector<8x128xf32>
      %1198 = arith.mulf %1197, %1190 : vector<8x128xf32>
      %1199 = arith.subf %1055, %1194 : vector<8x128xf32>
      %1200 = arith.subf %1056, %1198 : vector<8x128xf32>
      %1201 = arith.mulf %1194, %1194 : vector<8x128xf32>
      %1202 = arith.mulf %1198, %1198 : vector<8x128xf32>
      %1203 = arith.addf %1201, %1202 : vector<8x128xf32>
      %1204 = arith.mulf %1199, %1199 : vector<8x128xf32>
      %cst_149 = arith.constant 1.000000e+00 : f32
      %1205 = vector.broadcast %cst_149 : f32 to vector<8x128xf32>
      %1206 = arith.addf %1205, %1204 : vector<8x128xf32>
      %1207 = arith.mulf %1200, %1200 : vector<8x128xf32>
      %1208 = arith.addf %1206, %1207 : vector<8x128xf32>
      %1209 = arith.divf %1203, %1208 : vector<8x128xf32>
      %1210 = vector.shape_cast %1209 : vector<8x128xf32> to vector<1x8x128xf32>
      %cst_150 = arith.constant dense<0xFF800000> : vector<1xf32>
      %1211 = vector.multi_reduction <maximumf>, %1210, %cst_150 [1, 2] : vector<1x8x128xf32> to vector<1xf32>
      %1212 = vector.shape_cast %1211 : vector<1xf32> to vector<1x1x1xf32>
      %1213 = vector.extract %1212[0, 0, 0] : f32 from vector<1x1x1xf32>
      %c8_i32 = arith.constant 8 : i32
      %1214 = arith.addi %arg4, %c8_i32 : i32
      scf.yield %1214, %1199, %1200, %1213 : i32, vector<8x128xf32>, vector<8x128xf32>, f32
    }
    %c0_6 = arith.constant 0 : index
    %c0_7 = arith.constant 0 : index
    %45 = vector.load %arg2[%c0_6, %c0_7] : memref<8x128xf32, #tpu.memory_space<vmem>>, vector<8x128xf32>
    tpu.vector_store %arg2[%c0_6, %c0_7], %44#1 {strides = array<i32>} : memref<8x128xf32, #tpu.memory_space<vmem>>, vector<8x128xf32>,
    %c0_8 = arith.constant 0 : index
    %c0_9 = arith.constant 0 : index
    %46 = vector.load %arg3[%c0_8, %c0_9] : memref<8x128xf32, #tpu.memory_space<vmem>>, vector<8x128xf32>
    tpu.vector_store %arg3[%c0_8, %c0_9], %44#2 {strides = array<i32>} : memref<8x128xf32, #tpu.memory_space<vmem>>, vector<8x128xf32>,
    return
  }
  func.func @transform_0(%arg0: i32) -> (i32, i32) {
    %c0_i32 = arith.constant 0 : i32
    %c0_i32_0 = arith.constant 0 : i32
    return %c0_i32, %arg0 : i32, i32
  }
  func.func @transform_1(%arg0: i32) -> (i32, i32) {
    %c0_i32 = arith.constant 0 : i32
    %c0_i32_0 = arith.constant 0 : i32
    return %c0_i32, %arg0 : i32, i32
  }
  func.func @transform_2(%arg0: i32) -> (i32, i32) {
    %c0_i32 = arith.constant 0 : i32
    %c0_i32_0 = arith.constant 0 : i32
    return %c0_i32, %arg0 : i32, i32
  }
}

</mosaic_0001>

<llo_original>
// kernel: tpu_custom_call.1
$region0: #{tpu_custom_call.1}
  #allocation0 [shape = 'u32[]', space=smem, size = 0x4, offset = 0x4, fixed_abs, tag = 'smem constant byte address 0x4 - core index']
  #allocation1 [shape = 'u32[144,128]{1,0:T(1,128)}', space=vmem, size = 0x12000, scoped, tag = 'internal scratch']
  %s0 = inlined_call_operand.hbm [shape: f32[9,128], index: 0, kind: input, shape index: {}]
  %s1 = inlined_call_operand.hbm [shape: f32[8,128], index: 1, kind: output, shape index: {0}]
  %s2 = inlined_call_operand.hbm [shape: f32[8,128], index: 2, kind: output, shape index: {1}]
  %3 = xla_tuple %s1, %s2
  %s4 = sld [smem:[#allocation0]]
  $region33: #{tpu_custom_call.1} parent=0
    _
  %s6 = ssub.s32 1, %s4
  %s7 = scalar_select 0, %s6, %s4
  $region1: #{tpu_custom_call.1} parent=0
    #allocation2 [shape = 'u8[8192]{0}', space=vmem, size = 0x2000, scoped, tag = 'input window, operand 0, single buffered']
    #allocation3 [shape = 's32[1]{0}', space=sflag, size = 0x4, scoped, tag = 'scoped memory for tpu_custom_call.1']
    #allocation4 [shape = 's32[1]{0}', space=sflag, size = 0x4, scoped, tag = 'scoped memory for tpu_custom_call.1']
    #allocation5 [shape = 'u8[4096]{0}', space=vmem, size = 0x1000, scoped, tag = 'output window, operand 0, single buffered']
    #allocation6 [shape = 'u8[4096]{0}', space=vmem, size = 0x1000, scoped, tag = 'output window, operand 1, single buffered']
    #allocation7 [shape = 's32[1]{0}', space=sflag, size = 0x4, scoped, tag = 'scoped memory for tpu_custom_call.1']
    %8 = vsyncpa [#allocation3], 0
    %9 = vsyncpa [#allocation4], 0
    %10 = vsyncpa [#allocation7], 0
    // Predicated region
    $region2: #{tpu_custom_call.1} parent=1 // pred_check
      _
    $region3: #{tpu_custom_call.1} parent=1 // pred_check_branch
      %12 = sbr.rel (0) target = $region5
    $region4: #{tpu_custom_call.1} parent=1 // pred_region
      %s14 = ssub.s32 256, 256
      %15 = vsyncadd [#allocation3], %s14
      %s16 = sshll.u32 [#allocation2], 4
      %s17 = int_to_ptr.vmem [resolvable:$true] %s16
      %22 = dma.hbm_to_vmem [thread:$0]  %s0, 256, %s17, [#allocation3], 128, 128, 8
    $region5: #{tpu_custom_call.1} parent=1 // pred_fallthru
      _
    // Predicated region
    $region6: #{tpu_custom_call.1} parent=1 // pred_check
      _
    $region7: #{tpu_custom_call.1} parent=1 // pred_check_branch
      %24 = sbr.rel (0) target = $region9
    $region8: #{tpu_custom_call.1} parent=1 // pred_region
      %25 = dma.done [#allocation3], 256
    $region9: #{tpu_custom_call.1} parent=1 // pred_fallthru
      _
    %v26 = vld [vmem:[#allocation2] sm:$0xff]
    %v27 = vld [vmem:[#allocation2 + $0x8] sm:$0x1]
    %v28 = vrcp.pop %v26
    %v29 = vmul.f32 1.0, %v28
    %v30 = vlaneseq
    %v31 = vshrl.u32 %v30, 7
    %v32 = vsub.s32 0, %v31
    %v33 = vrot.slane %v29, %v32
    %v34 = vmul.f32 %v26, %v33
    %v35 = vmul.f32 %v27, %v33
    %v36 = vlaneseq
    %v37 = vshrl.u32 %v36, 7
    %v38 = vsub.s32 1, %v37
    %v39 = vrot.slane %v34, %v38
    %v40 = vlaneseq
    %v41 = vshrl.u32 %v40, 7
    %v42 = vsub.s32 2, %v41
    %v43 = vrot.slane %v34, %v42
    %v44 = vlaneseq
    %v45 = vshrl.u32 %v44, 7
    %v46 = vsub.s32 3, %v45
    %v47 = vrot.slane %v34, %v46
    %v48 = vlaneseq
    %v49 = vshrl.u32 %v48, 7
    %v50 = vsub.s32 4, %v49
    %v51 = vrot.slane %v34, %v50
    %v52 = vlaneseq
    %v53 = vshrl.u32 %v52, 7
    %v54 = vsub.s32 5, %v53
    %v55 = vrot.slane %v34, %v54
    %v56 = vlaneseq
    %v57 = vshrl.u32 %v56, 7
    %v58 = vsub.s32 6, %v57
    %v59 = vrot.slane %v34, %v58
    %v60 = vlaneseq
    %v61 = vshrl.u32 %v60, 7
    %v62 = vsub.s32 7, %v61
    %v63 = vrot.slane %v34, %v62
    %v64 = vlaneseq
    %v65 = vshrl.u32 %v64, 7
    %v66 = vsub.s32 0, %v65
    %v67 = vrot.slane %v35, %v66
    %v68 = vlaneseq
    %v69 = vshrl.u32 %v68, 7
    %v70 = vcvt.s32.f32 %v69
    %v71 = vmul.f32 %v70, -0.015229604
    %v72 = vmul.f32 %v71, 1.442695
    %v73 = vpow.pop %v72
    %v74 = vmul.f32 %v70, 1.152572
    %v75 = vand.u32 2147483647, %v74
    %vm76 = vcmp.le.f32.partialorder %v75, 0.7853982
    %vm77 = vcmp.lt.s32.totalorder %v74, 0
    %v78 = vand.u32 %v74, 2139095040
    %v79 = vshrl.u32 %v78, 23
    %v80 = vsub.s32 %v79, 127
    %v81 = vand.u32 2147483647, %v74
    %v82 = vand.u32 %v81, 8388607
    %v83 = vor.u32 %v82, 8388608
    %v84 = vsub.s32 0, %v83
    %v85 = vadd.s32 %v80, 1
    %vm86 = vcmp.gt.s32.totalorder %v85, 0
    %v87 = vsel %vm86, %v85, 0
    %v88 = vshrl.u32 %v87, 5
    %v89 = vand.u32 %v87, 31
    %v90 = vsub.s32 32, %v89
    %v91 = vshrl.u32 683565275, %v90
    %v92 = vshll.u32 683565275, %v89
    %v93 = vshrl.u32 2475754826, %v90
    %v94 = vor.u32 %v92, %v93
    %v95 = vshll.u32 2475754826, %v89
    %v96 = vshrl.u32 2131351028, %v90
    %v97 = vor.u32 %v95, %v96
    %v98 = vshll.u32 2131351028, %v89
    %v99 = vshrl.u32 2102212464, %v90
    %v100 = vor.u32 %v98, %v99
    %v101 = vshll.u32 2102212464, %v89
    %v102 = vshrl.u32 920167782, %v90
    %v103 = vor.u32 %v101, %v102
    %v104 = vshll.u32 920167782, %v89
    %v105 = vshrl.u32 1326507024, %v90
    %v106 = vor.u32 %v104, %v105
    %vm107 = vcmp.lt.s32.totalorder %v88, 1
    %vm108 = vcmp.lt.s32.totalorder %v88, 2
    %vm109 = vcmp.lt.s32.totalorder %v88, 3
    %vm110 = vcmp.lt.s32.totalorder %v88, 4
    %v111 = vsel %vm107, %v91, %v94
    %v112 = vsel %vm110, %v100, 2102212464
    %v113 = vsel %vm109, %v97, %v112
    %v114 = vsel %vm108, %v111, %v113
    %v115 = vsel %vm107, %v94, %v97
    %v116 = vsel %vm110, %v103, 920167782
    %v117 = vsel %vm109, %v100, %v116
    %v118 = vsel %vm108, %v115, %v117
    %v119 = vsel %vm107, %v97, %v100
    %v120 = vsel %vm110, %v106, 1326507024
    %v121 = vsel %vm109, %v103, %v120
    %v122 = vsel %vm108, %v119, %v121
    %v123 = vshll.u32 %v83, 8
    %v124 = vmul.u32.u64.compose %v123, %v122
    %v125 = vextract.low.u32 %v124
    %v126 = vextract.high.u32 %v124
    %v127 = vmul.u32.u64.compose %v123, %v118
    %v128 = vextract.low.u32 %v127
    %v129 = vextract.high.u32 %v127
    %v130 = vmul.u32 %v123, %v114
    %v131 = vadd.s32 %v126, %v128
    %vm132 = vc.u32 %v126, %v128
    %v133 = vadd.s32 %v129, 1
    %v134 = vsel %vm132, %v133, %v129
    %v135 = vadd.s32 %v130, %v134
    %v136 = vadd.s32 %v135, 536870912
    %v137 = vshrl.u32 %v136, 30
    %v138 = vshll.u32 %v137, 30
    %v139 = vsub.s32 %v135, %v138
    %vm140 = vcmp.lt.s32.totalorder %v139, 0
    %v141 = vsub.s32 0, %v139
    %v142 = vsel %vm140, %v141, %v139
    %v143 = vclz %v142
    %v144 = vsub.s32 %v143, 2
    %vm145 = vcmp.gt.s32.totalorder 0, %v144
    %v146 = vsel %vm145, 0, %v144
    %v147 = vsub.s32 32, %v146
    %v148 = vshll.u32 %v139, %v146
    %v149 = vshrl.u32 %v131, %v147
    %v150 = vor.u32 %v148, %v149
    %v151 = vsub.s32 4294967266, %v146
    %v152 = vadd.s32 %v151, 127
    %v153 = vshll.u32 %v152, 23
    %v154 = vor.u32 4788187, %v153
    %v155 = vand.u32 2147483647, %v154
    %v157 = vcvt.s32.f32 %v150
    %v158 = vmul.f32 %v157, %v155
    %v159 = vxor.u32 %v158, 2147483648
    %v160 = vsel %vm77, %v159, %v158
    %v161 = vsub.s32 4, %v137
    %v162 = vsel %vm77, %v161, %v137
    %v163 = vsel %vm76, %v74, %v160
    %v164 = vsel %vm76, 0, %v162
    %v165 = vcosq.f32.pop %v163
    %v166 = vsinq.f32.pop %v163
    %vm167 = vweird.f32 %v74
    %v168 = vand.u32 %v164, 3
    %vm169 = vcmp.lt.s32.totalorder %v168, 2
    %vm170 = vcmp.eq.s32.totalorder %v168, 0
    %v171 = vxor.u32 %v166, 2147483648
    %v172 = vsel %vm170, %v165, %v171
    %vm173 = vcmp.eq.s32.totalorder %v168, 2
    %v174 = vxor.u32 %v165, 2147483648
    %v175 = vsel %vm173, %v174, %v166
    %v176 = vsel %vm169, %v172, %v175
    %v177 = vsel %vm167, nan, %v176
    %v178 = vmul.f32 %v73, %v177
    %v179 = vand.u32 2147483647, %v74
    %vm180 = vcmp.le.f32.partialorder %v179, 0.7853982
    %vm181 = vcmp.lt.s32.totalorder %v74, 0
    %v182 = vand.u32 %v74, 2139095040
    %v183 = vshrl.u32 %v182, 23
    %v184 = vsub.s32 %v183, 127
    %v185 = vand.u32 2147483647, %v74
    %v186 = vand.u32 %v185, 8388607
    %v187 = vor.u32 %v186, 8388608
    %v188 = vsub.s32 0, %v187
    %v189 = vadd.s32 %v184, 1
    %vm190 = vcmp.gt.s32.totalorder %v189, 0
    %v191 = vsel %vm190, %v189, 0
    %v192 = vshrl.u32 %v191, 5
    %v193 = vand.u32 %v191, 31
    %v194 = vsub.s32 32, %v193
    %v195 = vshrl.u32 683565275, %v194
    %v196 = vshll.u32 683565275, %v193
    %v197 = vshrl.u32 2475754826, %v194
    %v198 = vor.u32 %v196, %v197
    %v199 = vshll.u32 2475754826, %v193
    %v200 = vshrl.u32 2131351028, %v194
    %v201 = vor.u32 %v199, %v200
    %v202 = vshll.u32 2131351028, %v193
    %v203 = vshrl.u32 2102212464, %v194
    %v204 = vor.u32 %v202, %v203
    %v205 = vshll.u32 2102212464, %v193
    %v206 = vshrl.u32 920167782, %v194
    %v207 = vor.u32 %v205, %v206
    %v208 = vshll.u32 920167782, %v193
    %v209 = vshrl.u32 1326507024, %v194
    %v210 = vor.u32 %v208, %v209
    %vm211 = vcmp.lt.s32.totalorder %v192, 1
    %vm212 = vcmp.lt.s32.totalorder %v192, 2
    %vm213 = vcmp.lt.s32.totalorder %v192, 3
    %vm214 = vcmp.lt.s32.totalorder %v192, 4
    %v215 = vsel %vm211, %v195, %v198
    %v216 = vsel %vm214, %v204, 2102212464
    %v217 = vsel %vm213, %v201, %v216
    %v218 = vsel %vm212, %v215, %v217
    %v219 = vsel %vm211, %v198, %v201
    %v220 = vsel %vm214, %v207, 920167782
    %v221 = vsel %vm213, %v204, %v220
    %v222 = vsel %vm212, %v219, %v221
    %v223 = vsel %vm211, %v201, %v204
    %v224 = vsel %vm214, %v210, 1326507024
    %v225 = vsel %vm213, %v207, %v224
    %v226 = vsel %vm212, %v223, %v225
    %v227 = vshll.u32 %v187, 8
    %v228 = vmul.u32.u64.compose %v227, %v226
    %v229 = vextract.low.u32 %v228
    %v230 = vextract.high.u32 %v228
    %v231 = vmul.u32.u64.compose %v227, %v222
    %v232 = vextract.low.u32 %v231
    %v233 = vextract.high.u32 %v231
    %v234 = vmul.u32 %v227, %v218
    %v235 = vadd.s32 %v230, %v232
    %vm236 = vc.u32 %v230, %v232
    %v237 = vadd.s32 %v233, 1
    %v238 = vsel %vm236, %v237, %v233
    %v239 = vadd.s32 %v234, %v238
    %v240 = vadd.s32 %v239, 536870912
    %v241 = vshrl.u32 %v240, 30
    %v242 = vshll.u32 %v241, 30
    %v243 = vsub.s32 %v239, %v242
    %vm244 = vcmp.lt.s32.totalorder %v243, 0
    %v245 = vsub.s32 0, %v243
    %v246 = vsel %vm244, %v245, %v243
    %v247 = vclz %v246
    %v248 = vsub.s32 %v247, 2
    %vm249 = vcmp.gt.s32.totalorder 0, %v248
    %v250 = vsel %vm249, 0, %v248
    %v251 = vsub.s32 32, %v250
    %v252 = vshll.u32 %v243, %v250
    %v253 = vshrl.u32 %v235, %v251
    %v254 = vor.u32 %v252, %v253
    %v255 = vsub.s32 4294967266, %v250
    %v256 = vadd.s32 %v255, 127
    %v257 = vshll.u32 %v256, 23
    %v258 = vor.u32 4788187, %v257
    %v259 = vand.u32 2147483647, %v258
    %v261 = vcvt.s32.f32 %v254
    %v262 = vmul.f32 %v261, %v259
    %v263 = vxor.u32 %v262, 2147483648
    %v264 = vsel %vm181, %v263, %v262
    %v265 = vsub.s32 4, %v241
    %v266 = vsel %vm181, %v265, %v241
    %v267 = vsel %vm180, %v74, %v264
    %v268 = vsel %vm180, 0, %v266
    %v269 = vcosq.f32.pop %v267
    %v270 = vsinq.f32.pop %v267
    %vm271 = vweird.f32 %v74
    %v272 = vadd.s32 %v268, 3
    %v273 = vand.u32 %v272, 3
    %vm274 = vcmp.lt.s32.totalorder %v273, 2
    %vm275 = vcmp.eq.s32.totalorder %v273, 0
    %v276 = vxor.u32 %v270, 2147483648
    %v277 = vsel %vm275, %v269, %v276
    %vm278 = vcmp.eq.s32.totalorder %v273, 2
    %v279 = vxor.u32 %v269, 2147483648
    %v280 = vsel %vm278, %v279, %v270
    %v281 = vsel %vm274, %v277, %v280
    %v282 = vsel %vm271, nan, %v281
    %v283 = vmul.f32 %v73, %v282
    // While loop
    $region10: #{tpu_custom_call.1} parent=1 // loop_pre_header
      _
    $region11: #{tpu_custom_call.1} parent=1 // loop_header
      %s285 = sphi 0, %s1402
      %v286 = vphi %v178, %v1382
      %v287 = vphi %v283, %v1383
      %s288 = sphi inf, %s1401
      %p289 = scmp.lt.s32.totalorder %s285, 256
      %p290 = scmp.le.f32.partialorder %s288, 1e-10
      %p291 = pneg %p290
      %p292 = pnand %p289, %p291
      %p293 = pneg %p292
    $region12: #{tpu_custom_call.1} parent=1 // loop_header_branch
      %295 = sbr.rel (%p292) target = $region16
    $region13: #{tpu_custom_call.1} parent=1 // loop_body
      %v296 = vmul.f32 %v287, 0.0
      %v297 = vsub.f32 %v286, %v296
      %v298 = vadd.f32 %v297, %v39
      %v299 = vmul.f32 %v286, 0.0
      %v300 = vadd.f32 %v287, %v299
      %v301 = vmul.f32 %v298, %v286
      %v302 = vmul.f32 %v300, %v287
      %v303 = vsub.f32 %v301, %v302
      %v304 = vadd.f32 %v303, %v43
      %v305 = vmul.f32 %v298, %v287
      %v306 = vmul.f32 %v300, %v286
      %v307 = vadd.f32 %v305, %v306
      %v308 = vmul.f32 %v304, %v286
      %v309 = vmul.f32 %v307, %v287
      %v310 = vsub.f32 %v308, %v309
      %v311 = vadd.f32 %v310, %v47
      %v312 = vmul.f32 %v304, %v287
      %v313 = vmul.f32 %v307, %v286
      %v314 = vadd.f32 %v312, %v313
      %v315 = vmul.f32 %v311, %v286
      %v316 = vmul.f32 %v314, %v287
      %v317 = vsub.f32 %v315, %v316
      %v318 = vadd.f32 %v317, %v51
      %v319 = vmul.f32 %v311, %v287
      %v320 = vmul.f32 %v314, %v286
      %v321 = vadd.f32 %v319, %v320
      %v322 = vmul.f32 %v318, %v286
      %v323 = vmul.f32 %v321, %v287
      %v324 = vsub.f32 %v322, %v323
      %v325 = vadd.f32 %v324, %v55
      %v326 = vmul.f32 %v318, %v287
      %v327 = vmul.f32 %v321, %v286
      %v328 = vadd.f32 %v326, %v327
      %v329 = vmul.f32 %v325, %v286
      %v330 = vmul.f32 %v328, %v287
      %v331 = vsub.f32 %v329, %v330
      %v332 = vadd.f32 %v331, %v59
      %v333 = vmul.f32 %v325, %v287
      %v334 = vmul.f32 %v328, %v286
      %v335 = vadd.f32 %v333, %v334
      %v336 = vmul.f32 %v332, %v286
      %v337 = vmul.f32 %v335, %v287
      %v338 = vsub.f32 %v336, %v337
      %v339 = vadd.f32 %v338, %v63
      %v340 = vmul.f32 %v332, %v287
      %v341 = vmul.f32 %v335, %v286
      %v342 = vadd.f32 %v340, %v341
      %v343 = vmul.f32 %v339, %v286
      %v344 = vmul.f32 %v342, %v287
      %v345 = vsub.f32 %v343, %v344
      %v346 = vadd.f32 %v345, %v67
      %v347 = vmul.f32 %v339, %v287
      %v348 = vmul.f32 %v342, %v286
      %v349 = vadd.f32 %v347, %v348
      %v350 = vrot.slane %v286, 7
      %v351 = vsub.f32 %v286, %v350
      %v352 = vrot.slane %v287, 7
      %v353 = vsub.f32 %v287, %v352
      %v354 = vmul.f32 %v353, 0.0
      %v355 = vsub.f32 %v351, %v354
      %v356 = vmul.f32 %v351, 0.0
      %v357 = vadd.f32 %v353, %v356
      %v358 = vrot.slane %v286, 6
      %v359 = vsub.f32 %v286, %v358
      %v360 = vrot.slane %v287, 6
      %v361 = vsub.f32 %v287, %v360
      %v362 = vmul.f32 %v355, %v359
      %v363 = vmul.f32 %v357, %v361
      %v364 = vsub.f32 %v362, %v363
      %v365 = vmul.f32 %v355, %v361
      %v366 = vmul.f32 %v357, %v359
      %v367 = vadd.f32 %v365, %v366
      %v368 = vrot.slane %v286, 5
      %v369 = vsub.f32 %v286, %v368
      %v370 = vrot.slane %v287, 5
      %v371 = vsub.f32 %v287, %v370
      %v372 = vmul.f32 %v364, %v369
      %v373 = vmul.f32 %v367, %v371
      %v374 = vsub.f32 %v372, %v373
      %v375 = vmul.f32 %v364, %v371
      %v376 = vmul.f32 %v367, %v369
      %v377 = vadd.f32 %v375, %v376
      %v378 = vrot.slane %v286, 4
      %v379 = vsub.f32 %v286, %v378
      %v380 = vrot.slane %v287, 4
      %v381 = vsub.f32 %v287, %v380
      %v382 = vmul.f32 %v374, %v379
      %v383 = vmul.f32 %v377, %v381
      %v384 = vsub.f32 %v382, %v383
      %v385 = vmul.f32 %v374, %v381
      %v386 = vmul.f32 %v377, %v379
      %v387 = vadd.f32 %v385, %v386
      %v388 = vrot.slane %v286, 3
      %v389 = vsub.f32 %v286, %v388
      %v390 = vrot.slane %v287, 3
      %v391 = vsub.f32 %v287, %v390
      %v392 = vmul.f32 %v384, %v389
      %v393 = vmul.f32 %v387, %v391
      %v394 = vsub.f32 %v392, %v393
      %v395 = vmul.f32 %v384, %v391
      %v396 = vmul.f32 %v387, %v389
      %v397 = vadd.f32 %v395, %v396
      %v398 = vrot.slane %v286, 2
      %v399 = vsub.f32 %v286, %v398
      %v400 = vrot.slane %v287, 2
      %v401 = vsub.f32 %v287, %v400
      %v402 = vmul.f32 %v394, %v399
      %v403 = vmul.f32 %v397, %v401
      %v404 = vsub.f32 %v402, %v403
      %v405 = vmul.f32 %v394, %v401
      %v406 = vmul.f32 %v397, %v399
      %v407 = vadd.f32 %v405, %v406
      %v408 = vrot.slane %v286, 1
      %v409 = vsub.f32 %v286, %v408
      %v410 = vrot.slane %v287, 1
      %v411 = vsub.f32 %v287, %v410
      %v412 = vmul.f32 %v404, %v409
      %v413 = vmul.f32 %v407, %v411
      %v414 = vsub.f32 %v412, %v413
      %v415 = vmul.f32 %v404, %v411
      %v416 = vmul.f32 %v407, %v409
      %v417 = vadd.f32 %v415, %v416
      %v418 = vmul.f32 %v414, %v414
      %v419 = vmul.f32 %v417, %v417
      %v420 = vadd.f32 %v418, %v419
      %v421 = vrcp.pop %v420
      %v422 = vmul.f32 %v346, %v414
      %v423 = vmul.f32 %v349, %v417
      %v424 = vadd.f32 %v422, %v423
      %v425 = vmul.f32 %v424, %v421
      %v426 = vmul.f32 %v349, %v414
      %v427 = vmul.f32 %v346, %v417
      %v428 = vsub.f32 %v426, %v427
      %v429 = vmul.f32 %v428, %v421
      %v430 = vsub.f32 %v286, %v425
      %v431 = vsub.f32 %v287, %v429
      %v432 = vmul.f32 %v431, 0.0
      %v433 = vsub.f32 %v430, %v432
      %v434 = vadd.f32 %v433, %v39
      %v435 = vmul.f32 %v430, 0.0
      %v436 = vadd.f32 %v431, %v435
      %v437 = vmul.f32 %v434, %v430
      %v438 = vmul.f32 %v436, %v431
      %v439 = vsub.f32 %v437, %v438
      %v440 = vadd.f32 %v439, %v43
      %v441 = vmul.f32 %v434, %v431
      %v442 = vmul.f32 %v436, %v430
      %v443 = vadd.f32 %v441, %v442
      %v444 = vmul.f32 %v440, %v430
      %v445 = vmul.f32 %v443, %v431
      %v446 = vsub.f32 %v444, %v445
      %v447 = vadd.f32 %v446, %v47
      %v448 = vmul.f32 %v440, %v431
      %v449 = vmul.f32 %v443, %v430
      %v450 = vadd.f32 %v448, %v449
      %v451 = vmul.f32 %v447, %v430
      %v452 = vmul.f32 %v450, %v431
      %v453 = vsub.f32 %v451, %v452
      %v454 = vadd.f32 %v453, %v51
      %v455 = vmul.f32 %v447, %v431
      %v456 = vmul.f32 %v450, %v430
      %v457 = vadd.f32 %v455, %v456
      %v458 = vmul.f32 %v454, %v430
      %v459 = vmul.f32 %v457, %v431
      %v460 = vsub.f32 %v458, %v459
      %v461 = vadd.f32 %v460, %v55
      %v462 = vmul.f32 %v454, %v431
      %v463 = vmul.f32 %v457, %v430
      %v464 = vadd.f32 %v462, %v463
      %v465 = vmul.f32 %v461, %v430
      %v466 = vmul.f32 %v464, %v431
      %v467 = vsub.f32 %v465, %v466
      %v468 = vadd.f32 %v467, %v59
      %v469 = vmul.f32 %v461, %v431
      %v470 = vmul.f32 %v464, %v430
      %v471 = vadd.f32 %v469, %v470
      %v472 = vmul.f32 %v468, %v430
      %v473 = vmul.f32 %v471, %v431
      %v474 = vsub.f32 %v472, %v473
      %v475 = vadd.f32 %v474, %v63
      %v476 = vmul.f32 %v468, %v431
      %v477 = vmul.f32 %v471, %v430
      %v478 = vadd.f32 %v476, %v477
      %v479 = vmul.f32 %v475, %v430
      %v480 = vmul.f32 %v478, %v431
      %v481 = vsub.f32 %v479, %v480
      %v482 = vadd.f32 %v481, %v67
      %v483 = vmul.f32 %v475, %v431
      %v484 = vmul.f32 %v478, %v430
      %v485 = vadd.f32 %v483, %v484
      %v486 = vrot.slane %v430, 7
      %v487 = vsub.f32 %v430, %v486
      %v488 = vrot.slane %v431, 7
      %v489 = vsub.f32 %v431, %v488
      %v490 = vmul.f32 %v489, 0.0
      %v491 = vsub.f32 %v487, %v490
      %v492 = vmul.f32 %v487, 0.0
      %v493 = vadd.f32 %v489, %v492
      %v494 = vrot.slane %v430, 6
      %v495 = vsub.f32 %v430, %v494
      %v496 = vrot.slane %v431, 6
      %v497 = vsub.f32 %v431, %v496
      %v498 = vmul.f32 %v491, %v495
      %v499 = vmul.f32 %v493, %v497
      %v500 = vsub.f32 %v498, %v499
      %v501 = vmul.f32 %v491, %v497
      %v502 = vmul.f32 %v493, %v495
      %v503 = vadd.f32 %v501, %v502
      %v504 = vrot.slane %v430, 5
      %v505 = vsub.f32 %v430, %v504
      %v506 = vrot.slane %v431, 5
      %v507 = vsub.f32 %v431, %v506
      %v508 = vmul.f32 %v500, %v505
      %v509 = vmul.f32 %v503, %v507
      %v510 = vsub.f32 %v508, %v509
      %v511 = vmul.f32 %v500, %v507
      %v512 = vmul.f32 %v503, %v505
      %v513 = vadd.f32 %v511, %v512
      %v514 = vrot.slane %v430, 4
      %v515 = vsub.f32 %v430, %v514
      %v516 = vrot.slane %v431, 4
      %v517 = vsub.f32 %v431, %v516
      %v518 = vmul.f32 %v510, %v515
      %v519 = vmul.f32 %v513, %v517
      %v520 = vsub.f32 %v518, %v519
      %v521 = vmul.f32 %v510, %v517
      %v522 = vmul.f32 %v513, %v515
      %v523 = vadd.f32 %v521, %v522
      %v524 = vrot.slane %v430, 3
      %v525 = vsub.f32 %v430, %v524
      %v526 = vrot.slane %v431, 3
      %v527 = vsub.f32 %v431, %v526
      %v528 = vmul.f32 %v520, %v525
      %v529 = vmul.f32 %v523, %v527
      %v530 = vsub.f32 %v528, %v529
      %v531 = vmul.f32 %v520, %v527
      %v532 = vmul.f32 %v523, %v525
      %v533 = vadd.f32 %v531, %v532
      %v534 = vrot.slane %v430, 2
      %v535 = vsub.f32 %v430, %v534
      %v536 = vrot.slane %v431, 2
      %v537 = vsub.f32 %v431, %v536
      %v538 = vmul.f32 %v530, %v535
      %v539 = vmul.f32 %v533, %v537
      %v540 = vsub.f32 %v538, %v539
      %v541 = vmul.f32 %v530, %v537
      %v542 = vmul.f32 %v533, %v535
      %v543 = vadd.f32 %v541, %v542
      %v544 = vrot.slane %v430, 1
      %v545 = vsub.f32 %v430, %v544
      %v546 = vrot.slane %v431, 1
      %v547 = vsub.f32 %v431, %v546
      %v548 = vmul.f32 %v540, %v545
      %v549 = vmul.f32 %v543, %v547
      %v550 = vsub.f32 %v548, %v549
      %v551 = vmul.f32 %v540, %v547
      %v552 = vmul.f32 %v543, %v545
      %v553 = vadd.f32 %v551, %v552
      %v554 = vmul.f32 %v550, %v550
      %v555 = vmul.f32 %v553, %v553
      %v556 = vadd.f32 %v554, %v555
      %v557 = vrcp.pop %v556
      %v558 = vmul.f32 %v482, %v550
      %v559 = vmul.f32 %v485, %v553
      %v560 = vadd.f32 %v558, %v559
      %v561 = vmul.f32 %v560, %v557
      %v562 = vmul.f32 %v485, %v550
      %v563 = vmul.f32 %v482, %v553
      %v564 = vsub.f32 %v562, %v563
      %v565 = vmul.f32 %v564, %v557
      %v566 = vsub.f32 %v430, %v561
      %v567 = vsub.f32 %v431, %v565
      %v568 = vmul.f32 %v567, 0.0
      %v569 = vsub.f32 %v566, %v568
      %v570 = vadd.f32 %v569, %v39
      %v571 = vmul.f32 %v566, 0.0
      %v572 = vadd.f32 %v567, %v571
      %v573 = vmul.f32 %v570, %v566
      %v574 = vmul.f32 %v572, %v567
      %v575 = vsub.f32 %v573, %v574
      %v576 = vadd.f32 %v575, %v43
      %v577 = vmul.f32 %v570, %v567
      %v578 = vmul.f32 %v572, %v566
      %v579 = vadd.f32 %v577, %v578
      %v580 = vmul.f32 %v576, %v566
      %v581 = vmul.f32 %v579, %v567
      %v582 = vsub.f32 %v580, %v581
      %v583 = vadd.f32 %v582, %v47
      %v584 = vmul.f32 %v576, %v567
      %v585 = vmul.f32 %v579, %v566
      %v586 = vadd.f32 %v584, %v585
      %v587 = vmul.f32 %v583, %v566
      %v588 = vmul.f32 %v586, %v567
      %v589 = vsub.f32 %v587, %v588
      %v590 = vadd.f32 %v589, %v51
      %v591 = vmul.f32 %v583, %v567
      %v592 = vmul.f32 %v586, %v566
      %v593 = vadd.f32 %v591, %v592
      %v594 = vmul.f32 %v590, %v566
      %v595 = vmul.f32 %v593, %v567
      %v596 = vsub.f32 %v594, %v595
      %v597 = vadd.f32 %v596, %v55
      %v598 = vmul.f32 %v590, %v567
      %v599 = vmul.f32 %v593, %v566
      %v600 = vadd.f32 %v598, %v599
      %v601 = vmul.f32 %v597, %v566
      %v602 = vmul.f32 %v600, %v567
      %v603 = vsub.f32 %v601, %v602
      %v604 = vadd.f32 %v603, %v59
      %v605 = vmul.f32 %v597, %v567
      %v606 = vmul.f32 %v600, %v566
      %v607 = vadd.f32 %v605, %v606
      %v608 = vmul.f32 %v604, %v566
      %v609 = vmul.f32 %v607, %v567
      %v610 = vsub.f32 %v608, %v609
      %v611 = vadd.f32 %v610, %v63
      %v612 = vmul.f32 %v604, %v567
      %v613 = vmul.f32 %v607, %v566
      %v614 = vadd.f32 %v612, %v613
      %v615 = vmul.f32 %v611, %v566
      %v616 = vmul.f32 %v614, %v567
      %v617 = vsub.f32 %v615, %v616
      %v618 = vadd.f32 %v617, %v67
      %v619 = vmul.f32 %v611, %v567
      %v620 = vmul.f32 %v614, %v566
      %v621 = vadd.f32 %v619, %v620
      %v622 = vrot.slane %v566, 7
      %v623 = vsub.f32 %v566, %v622
      %v624 = vrot.slane %v567, 7
      %v625 = vsub.f32 %v567, %v624
      %v626 = vmul.f32 %v625, 0.0
      %v627 = vsub.f32 %v623, %v626
      %v628 = vmul.f32 %v623, 0.0
      %v629 = vadd.f32 %v625, %v628
      %v630 = vrot.slane %v566, 6
      %v631 = vsub.f32 %v566, %v630
      %v632 = vrot.slane %v567, 6
      %v633 = vsub.f32 %v567, %v632
      %v634 = vmul.f32 %v627, %v631
      %v635 = vmul.f32 %v629, %v633
      %v636 = vsub.f32 %v634, %v635
      %v637 = vmul.f32 %v627, %v633
      %v638 = vmul.f32 %v629, %v631
      %v639 = vadd.f32 %v637, %v638
      %v640 = vrot.slane %v566, 5
      %v641 = vsub.f32 %v566, %v640
      %v642 = vrot.slane %v567, 5
      %v643 = vsub.f32 %v567, %v642
      %v644 = vmul.f32 %v636, %v641
      %v645 = vmul.f32 %v639, %v643
      %v646 = vsub.f32 %v644, %v645
      %v647 = vmul.f32 %v636, %v643
      %v648 = vmul.f32 %v639, %v641
      %v649 = vadd.f32 %v647, %v648
      %v650 = vrot.slane %v566, 4
      %v651 = vsub.f32 %v566, %v650
      %v652 = vrot.slane %v567, 4
      %v653 = vsub.f32 %v567, %v652
      %v654 = vmul.f32 %v646, %v651
      %v655 = vmul.f32 %v649, %v653
      %v656 = vsub.f32 %v654, %v655
      %v657 = vmul.f32 %v646, %v653
      %v658 = vmul.f32 %v649, %v651
      %v659 = vadd.f32 %v657, %v658
      %v660 = vrot.slane %v566, 3
      %v661 = vsub.f32 %v566, %v660
      %v662 = vrot.slane %v567, 3
      %v663 = vsub.f32 %v567, %v662
      %v664 = vmul.f32 %v656, %v661
      %v665 = vmul.f32 %v659, %v663
      %v666 = vsub.f32 %v664, %v665
      %v667 = vmul.f32 %v656, %v663
      %v668 = vmul.f32 %v659, %v661
      %v669 = vadd.f32 %v667, %v668
      %v670 = vrot.slane %v566, 2
      %v671 = vsub.f32 %v566, %v670
      %v672 = vrot.slane %v567, 2
      %v673 = vsub.f32 %v567, %v672
      %v674 = vmul.f32 %v666, %v671
      %v675 = vmul.f32 %v669, %v673
      %v676 = vsub.f32 %v674, %v675
      %v677 = vmul.f32 %v666, %v673
      %v678 = vmul.f32 %v669, %v671
      %v679 = vadd.f32 %v677, %v678
      %v680 = vrot.slane %v566, 1
      %v681 = vsub.f32 %v566, %v680
      %v682 = vrot.slane %v567, 1
      %v683 = vsub.f32 %v567, %v682
      %v684 = vmul.f32 %v676, %v681
      %v685 = vmul.f32 %v679, %v683
      %v686 = vsub.f32 %v684, %v685
      %v687 = vmul.f32 %v676, %v683
      %v688 = vmul.f32 %v679, %v681
      %v689 = vadd.f32 %v687, %v688
      %v690 = vmul.f32 %v686, %v686
      %v691 = vmul.f32 %v689, %v689
      %v692 = vadd.f32 %v690, %v691
      %v693 = vrcp.pop %v692
      %v694 = vmul.f32 %v618, %v686
      %v695 = vmul.f32 %v621, %v689
      %v696 = vadd.f32 %v694, %v695
      %v697 = vmul.f32 %v696, %v693
      %v698 = vmul.f32 %v621, %v686
      %v699 = vmul.f32 %v618, %v689
      %v700 = vsub.f32 %v698, %v699
      %v701 = vmul.f32 %v700, %v693
      %v702 = vsub.f32 %v566, %v697
      %v703 = vsub.f32 %v567, %v701
      %v704 = vmul.f32 %v703, 0.0
      %v705 = vsub.f32 %v702, %v704
      %v706 = vadd.f32 %v705, %v39
      %v707 = vmul.f32 %v702, 0.0
      %v708 = vadd.f32 %v703, %v707
      %v709 = vmul.f32 %v706, %v702
      %v710 = vmul.f32 %v708, %v703
      %v711 = vsub.f32 %v709, %v710
      %v712 = vadd.f32 %v711, %v43
      %v713 = vmul.f32 %v706, %v703
      %v714 = vmul.f32 %v708, %v702
      %v715 = vadd.f32 %v713, %v714
      %v716 = vmul.f32 %v712, %v702
      %v717 = vmul.f32 %v715, %v703
      %v718 = vsub.f32 %v716, %v717
      %v719 = vadd.f32 %v718, %v47
      %v720 = vmul.f32 %v712, %v703
      %v721 = vmul.f32 %v715, %v702
      %v722 = vadd.f32 %v720, %v721
      %v723 = vmul.f32 %v719, %v702
      %v724 = vmul.f32 %v722, %v703
      %v725 = vsub.f32 %v723, %v724
      %v726 = vadd.f32 %v725, %v51
      %v727 = vmul.f32 %v719, %v703
      %v728 = vmul.f32 %v722, %v702
      %v729 = vadd.f32 %v727, %v728
      %v730 = vmul.f32 %v726, %v702
      %v731 = vmul.f32 %v729, %v703
      %v732 = vsub.f32 %v730, %v731
      %v733 = vadd.f32 %v732, %v55
      %v734 = vmul.f32 %v726, %v703
      %v735 = vmul.f32 %v729, %v702
      %v736 = vadd.f32 %v734, %v735
      %v737 = vmul.f32 %v733, %v702
      %v738 = vmul.f32 %v736, %v703
      %v739 = vsub.f32 %v737, %v738
      %v740 = vadd.f32 %v739, %v59
      %v741 = vmul.f32 %v733, %v703
      %v742 = vmul.f32 %v736, %v702
      %v743 = vadd.f32 %v741, %v742
      %v744 = vmul.f32 %v740, %v702
      %v745 = vmul.f32 %v743, %v703
      %v746 = vsub.f32 %v744, %v745
      %v747 = vadd.f32 %v746, %v63
      %v748 = vmul.f32 %v740, %v703
      %v749 = vmul.f32 %v743, %v702
      %v750 = vadd.f32 %v748, %v749
      %v751 = vmul.f32 %v747, %v702
      %v752 = vmul.f32 %v750, %v703
      %v753 = vsub.f32 %v751, %v752
      %v754 = vadd.f32 %v753, %v67
      %v755 = vmul.f32 %v747, %v703
      %v756 = vmul.f32 %v750, %v702
      %v757 = vadd.f32 %v755, %v756
      %v758 = vrot.slane %v702, 7
      %v759 = vsub.f32 %v702, %v758
      %v760 = vrot.slane %v703, 7
      %v761 = vsub.f32 %v703, %v760
      %v762 = vmul.f32 %v761, 0.0
      %v763 = vsub.f32 %v759, %v762
      %v764 = vmul.f32 %v759, 0.0
      %v765 = vadd.f32 %v761, %v764
      %v766 = vrot.slane %v702, 6
      %v767 = vsub.f32 %v702, %v766
      %v768 = vrot.slane %v703, 6
      %v769 = vsub.f32 %v703, %v768
      %v770 = vmul.f32 %v763, %v767
      %v771 = vmul.f32 %v765, %v769
      %v772 = vsub.f32 %v770, %v771
      %v773 = vmul.f32 %v763, %v769
      %v774 = vmul.f32 %v765, %v767
      %v775 = vadd.f32 %v773, %v774
      %v776 = vrot.slane %v702, 5
      %v777 = vsub.f32 %v702, %v776
      %v778 = vrot.slane %v703, 5
      %v779 = vsub.f32 %v703, %v778
      %v780 = vmul.f32 %v772, %v777
      %v781 = vmul.f32 %v775, %v779
      %v782 = vsub.f32 %v780, %v781
      %v783 = vmul.f32 %v772, %v779
      %v784 = vmul.f32 %v775, %v777
      %v785 = vadd.f32 %v783, %v784
      %v786 = vrot.slane %v702, 4
      %v787 = vsub.f32 %v702, %v786
      %v788 = vrot.slane %v703, 4
      %v789 = vsub.f32 %v703, %v788
      %v790 = vmul.f32 %v782, %v787
      %v791 = vmul.f32 %v785, %v789
      %v792 = vsub.f32 %v790, %v791
      %v793 = vmul.f32 %v782, %v789
      %v794 = vmul.f32 %v785, %v787
      %v795 = vadd.f32 %v793, %v794
      %v796 = vrot.slane %v702, 3
      %v797 = vsub.f32 %v702, %v796
      %v798 = vrot.slane %v703, 3
      %v799 = vsub.f32 %v703, %v798
      %v800 = vmul.f32 %v792, %v797
      %v801 = vmul.f32 %v795, %v799
      %v802 = vsub.f32 %v800, %v801
      %v803 = vmul.f32 %v792, %v799
      %v804 = vmul.f32 %v795, %v797
      %v805 = vadd.f32 %v803, %v804
      %v806 = vrot.slane %v702, 2
      %v807 = vsub.f32 %v702, %v806
      %v808 = vrot.slane %v703, 2
      %v809 = vsub.f32 %v703, %v808
      %v810 = vmul.f32 %v802, %v807
      %v811 = vmul.f32 %v805, %v809
      %v812 = vsub.f32 %v810, %v811
      %v813 = vmul.f32 %v802, %v809
      %v814 = vmul.f32 %v805, %v807
      %v815 = vadd.f32 %v813, %v814
      %v816 = vrot.slane %v702, 1
      %v817 = vsub.f32 %v702, %v816
      %v818 = vrot.slane %v703, 1
      %v819 = vsub.f32 %v703, %v818
      %v820 = vmul.f32 %v812, %v817
      %v821 = vmul.f32 %v815, %v819
      %v822 = vsub.f32 %v820, %v821
      %v823 = vmul.f32 %v812, %v819
      %v824 = vmul.f32 %v815, %v817
      %v825 = vadd.f32 %v823, %v824
      %v826 = vmul.f32 %v822, %v822
      %v827 = vmul.f32 %v825, %v825
      %v828 = vadd.f32 %v826, %v827
      %v829 = vrcp.pop %v828
      %v830 = vmul.f32 %v754, %v822
      %v831 = vmul.f32 %v757, %v825
      %v832 = vadd.f32 %v830, %v831
      %v833 = vmul.f32 %v832, %v829
      %v834 = vmul.f32 %v757, %v822
      %v835 = vmul.f32 %v754, %v825
      %v836 = vsub.f32 %v834, %v835
      %v837 = vmul.f32 %v836, %v829
      %v838 = vsub.f32 %v702, %v833
      %v839 = vsub.f32 %v703, %v837
      %v840 = vmul.f32 %v839, 0.0
      %v841 = vsub.f32 %v838, %v840
      %v842 = vadd.f32 %v841, %v39
      %v843 = vmul.f32 %v838, 0.0
      %v844 = vadd.f32 %v839, %v843
      %v845 = vmul.f32 %v842, %v838
      %v846 = vmul.f32 %v844, %v839
      %v847 = vsub.f32 %v845, %v846
      %v848 = vadd.f32 %v847, %v43
      %v849 = vmul.f32 %v842, %v839
      %v850 = vmul.f32 %v844, %v838
      %v851 = vadd.f32 %v849, %v850
      %v852 = vmul.f32 %v848, %v838
      %v853 = vmul.f32 %v851, %v839
      %v854 = vsub.f32 %v852, %v853
      %v855 = vadd.f32 %v854, %v47
      %v856 = vmul.f32 %v848, %v839
      %v857 = vmul.f32 %v851, %v838
      %v858 = vadd.f32 %v856, %v857
      %v859 = vmul.f32 %v855, %v838
      %v860 = vmul.f32 %v858, %v839
      %v861 = vsub.f32 %v859, %v860
      %v862 = vadd.f32 %v861, %v51
      %v863 = vmul.f32 %v855, %v839
      %v864 = vmul.f32 %v858, %v838
      %v865 = vadd.f32 %v863, %v864
      %v866 = vmul.f32 %v862, %v838
      %v867 = vmul.f32 %v865, %v839
      %v868 = vsub.f32 %v866, %v867
      %v869 = vadd.f32 %v868, %v55
      %v870 = vmul.f32 %v862, %v839
      %v871 = vmul.f32 %v865, %v838
      %v872 = vadd.f32 %v870, %v871
      %v873 = vmul.f32 %v869, %v838
      %v874 = vmul.f32 %v872, %v839
      %v875 = vsub.f32 %v873, %v874
      %v876 = vadd.f32 %v875, %v59
      %v877 = vmul.f32 %v869, %v839
      %v878 = vmul.f32 %v872, %v838
      %v879 = vadd.f32 %v877, %v878
      %v880 = vmul.f32 %v876, %v838
      %v881 = vmul.f32 %v879, %v839
      %v882 = vsub.f32 %v880, %v881
      %v883 = vadd.f32 %v882, %v63
      %v884 = vmul.f32 %v876, %v839
      %v885 = vmul.f32 %v879, %v838
      %v886 = vadd.f32 %v884, %v885
      %v887 = vmul.f32 %v883, %v838
      %v888 = vmul.f32 %v886, %v839
      %v889 = vsub.f32 %v887, %v888
      %v890 = vadd.f32 %v889, %v67
      %v891 = vmul.f32 %v883, %v839
      %v892 = vmul.f32 %v886, %v838
      %v893 = vadd.f32 %v891, %v892
      %v894 = vrot.slane %v838, 7
      %v895 = vsub.f32 %v838, %v894
      %v896 = vrot.slane %v839, 7
      %v897 = vsub.f32 %v839, %v896
      %v898 = vmul.f32 %v897, 0.0
      %v899 = vsub.f32 %v895, %v898
      %v900 = vmul.f32 %v895, 0.0
      %v901 = vadd.f32 %v897, %v900
      %v902 = vrot.slane %v838, 6
      %v903 = vsub.f32 %v838, %v902
      %v904 = vrot.slane %v839, 6
      %v905 = vsub.f32 %v839, %v904
      %v906 = vmul.f32 %v899, %v903
      %v907 = vmul.f32 %v901, %v905
      %v908 = vsub.f32 %v906, %v907
      %v909 = vmul.f32 %v899, %v905
      %v910 = vmul.f32 %v901, %v903
      %v911 = vadd.f32 %v909, %v910
      %v912 = vrot.slane %v838, 5
      %v913 = vsub.f32 %v838, %v912
      %v914 = vrot.slane %v839, 5
      %v915 = vsub.f32 %v839, %v914
      %v916 = vmul.f32 %v908, %v913
      %v917 = vmul.f32 %v911, %v915
      %v918 = vsub.f32 %v916, %v917
      %v919 = vmul.f32 %v908, %v915
      %v920 = vmul.f32 %v911, %v913
      %v921 = vadd.f32 %v919, %v920
      %v922 = vrot.slane %v838, 4
      %v923 = vsub.f32 %v838, %v922
      %v924 = vrot.slane %v839, 4
      %v925 = vsub.f32 %v839, %v924
      %v926 = vmul.f32 %v918, %v923
      %v927 = vmul.f32 %v921, %v925
      %v928 = vsub.f32 %v926, %v927
      %v929 = vmul.f32 %v918, %v925
      %v930 = vmul.f32 %v921, %v923
      %v931 = vadd.f32 %v929, %v930
      %v932 = vrot.slane %v838, 3
      %v933 = vsub.f32 %v838, %v932
      %v934 = vrot.slane %v839, 3
      %v935 = vsub.f32 %v839, %v934
      %v936 = vmul.f32 %v928, %v933
      %v937 = vmul.f32 %v931, %v935
      %v938 = vsub.f32 %v936, %v937
      %v939 = vmul.f32 %v928, %v935
      %v940 = vmul.f32 %v931, %v933
      %v941 = vadd.f32 %v939, %v940
      %v942 = vrot.slane %v838, 2
      %v943 = vsub.f32 %v838, %v942
      %v944 = vrot.slane %v839, 2
      %v945 = vsub.f32 %v839, %v944
      %v946 = vmul.f32 %v938, %v943
      %v947 = vmul.f32 %v941, %v945
      %v948 = vsub.f32 %v946, %v947
      %v949 = vmul.f32 %v938, %v945
      %v950 = vmul.f32 %v941, %v943
      %v951 = vadd.f32 %v949, %v950
      %v952 = vrot.slane %v838, 1
      %v953 = vsub.f32 %v838, %v952
      %v954 = vrot.slane %v839, 1
      %v955 = vsub.f32 %v839, %v954
      %v956 = vmul.f32 %v948, %v953
      %v957 = vmul.f32 %v951, %v955
      %v958 = vsub.f32 %v956, %v957
      %v959 = vmul.f32 %v948, %v955
      %v960 = vmul.f32 %v951, %v953
      %v961 = vadd.f32 %v959, %v960
      %v962 = vmul.f32 %v958, %v958
      %v963 = vmul.f32 %v961, %v961
      %v964 = vadd.f32 %v962, %v963
      %v965 = vrcp.pop %v964
      %v966 = vmul.f32 %v890, %v958
      %v967 = vmul.f32 %v893, %v961
      %v968 = vadd.f32 %v966, %v967
      %v969 = vmul.f32 %v968, %v965
      %v970 = vmul.f32 %v893, %v958
      %v971 = vmul.f32 %v890, %v961
      %v972 = vsub.f32 %v970, %v971
      %v973 = vmul.f32 %v972, %v965
      %v974 = vsub.f32 %v838, %v969
      %v975 = vsub.f32 %v839, %v973
      %v976 = vmul.f32 %v975, 0.0
      %v977 = vsub.f32 %v974, %v976
      %v978 = vadd.f32 %v977, %v39
      %v979 = vmul.f32 %v974, 0.0
      %v980 = vadd.f32 %v975, %v979
      %v981 = vmul.f32 %v978, %v974
      %v982 = vmul.f32 %v980, %v975
      %v983 = vsub.f32 %v981, %v982
      %v984 = vadd.f32 %v983, %v43
      %v985 = vmul.f32 %v978, %v975
      %v986 = vmul.f32 %v980, %v974
      %v987 = vadd.f32 %v985, %v986
      %v988 = vmul.f32 %v984, %v974
      %v989 = vmul.f32 %v987, %v975
      %v990 = vsub.f32 %v988, %v989
      %v991 = vadd.f32 %v990, %v47
      %v992 = vmul.f32 %v984, %v975
      %v993 = vmul.f32 %v987, %v974
      %v994 = vadd.f32 %v992, %v993
      %v995 = vmul.f32 %v991, %v974
      %v996 = vmul.f32 %v994, %v975
      %v997 = vsub.f32 %v995, %v996
      %v998 = vadd.f32 %v997, %v51
      %v999 = vmul.f32 %v991, %v975
      %v1000 = vmul.f32 %v994, %v974
      %v1001 = vadd.f32 %v999, %v1000
      %v1002 = vmul.f32 %v998, %v974
      %v1003 = vmul.f32 %v1001, %v975
      %v1004 = vsub.f32 %v1002, %v1003
      %v1005 = vadd.f32 %v1004, %v55
      %v1006 = vmul.f32 %v998, %v975
      %v1007 = vmul.f32 %v1001, %v974
      %v1008 = vadd.f32 %v1006, %v1007
      %v1009 = vmul.f32 %v1005, %v974
      %v1010 = vmul.f32 %v1008, %v975
      %v1011 = vsub.f32 %v1009, %v1010
      %v1012 = vadd.f32 %v1011, %v59
      %v1013 = vmul.f32 %v1005, %v975
      %v1014 = vmul.f32 %v1008, %v974
      %v1015 = vadd.f32 %v1013, %v1014
      %v1016 = vmul.f32 %v1012, %v974
      %v1017 = vmul.f32 %v1015, %v975
      %v1018 = vsub.f32 %v1016, %v1017
      %v1019 = vadd.f32 %v1018, %v63
      %v1020 = vmul.f32 %v1012, %v975
      %v1021 = vmul.f32 %v1015, %v974
      %v1022 = vadd.f32 %v1020, %v1021
      %v1023 = vmul.f32 %v1019, %v974
      %v1024 = vmul.f32 %v1022, %v975
      %v1025 = vsub.f32 %v1023, %v1024
      %v1026 = vadd.f32 %v1025, %v67
      %v1027 = vmul.f32 %v1019, %v975
      %v1028 = vmul.f32 %v1022, %v974
      %v1029 = vadd.f32 %v1027, %v1028
      %v1030 = vrot.slane %v974, 7
      %v1031 = vsub.f32 %v974, %v1030
      %v1032 = vrot.slane %v975, 7
      %v1033 = vsub.f32 %v975, %v1032
      %v1034 = vmul.f32 %v1033, 0.0
      %v1035 = vsub.f32 %v1031, %v1034
      %v1036 = vmul.f32 %v1031, 0.0
      %v1037 = vadd.f32 %v1033, %v1036
      %v1038 = vrot.slane %v974, 6
      %v1039 = vsub.f32 %v974, %v1038
      %v1040 = vrot.slane %v975, 6
      %v1041 = vsub.f32 %v975, %v1040
      %v1042 = vmul.f32 %v1035, %v1039
      %v1043 = vmul.f32 %v1037, %v1041
      %v1044 = vsub.f32 %v1042, %v1043
      %v1045 = vmul.f32 %v1035, %v1041
      %v1046 = vmul.f32 %v1037, %v1039
      %v1047 = vadd.f32 %v1045, %v1046
      %v1048 = vrot.slane %v974, 5
      %v1049 = vsub.f32 %v974, %v1048
      %v1050 = vrot.slane %v975, 5
      %v1051 = vsub.f32 %v975, %v1050
      %v1052 = vmul.f32 %v1044, %v1049
      %v1053 = vmul.f32 %v1047, %v1051
      %v1054 = vsub.f32 %v1052, %v1053
      %v1055 = vmul.f32 %v1044, %v1051
      %v1056 = vmul.f32 %v1047, %v1049
      %v1057 = vadd.f32 %v1055, %v1056
      %v1058 = vrot.slane %v974, 4
      %v1059 = vsub.f32 %v974, %v1058
      %v1060 = vrot.slane %v975, 4
      %v1061 = vsub.f32 %v975, %v1060
      %v1062 = vmul.f32 %v1054, %v1059
      %v1063 = vmul.f32 %v1057, %v1061
      %v1064 = vsub.f32 %v1062, %v1063
      %v1065 = vmul.f32 %v1054, %v1061
      %v1066 = vmul.f32 %v1057, %v1059
      %v1067 = vadd.f32 %v1065, %v1066
      %v1068 = vrot.slane %v974, 3
      %v1069 = vsub.f32 %v974, %v1068
      %v1070 = vrot.slane %v975, 3
      %v1071 = vsub.f32 %v975, %v1070
      %v1072 = vmul.f32 %v1064, %v1069
      %v1073 = vmul.f32 %v1067, %v1071
      %v1074 = vsub.f32 %v1072, %v1073
      %v1075 = vmul.f32 %v1064, %v1071
      %v1076 = vmul.f32 %v1067, %v1069
      %v1077 = vadd.f32 %v1075, %v1076
      %v1078 = vrot.slane %v974, 2
      %v1079 = vsub.f32 %v974, %v1078
      %v1080 = vrot.slane %v975, 2
      %v1081 = vsub.f32 %v975, %v1080
      %v1082 = vmul.f32 %v1074, %v1079
      %v1083 = vmul.f32 %v1077, %v1081
      %v1084 = vsub.f32 %v1082, %v1083
      %v1085 = vmul.f32 %v1074, %v1081
      %v1086 = vmul.f32 %v1077, %v1079
      %v1087 = vadd.f32 %v1085, %v1086
      %v1088 = vrot.slane %v974, 1
      %v1089 = vsub.f32 %v974, %v1088
      %v1090 = vrot.slane %v975, 1
      %v1091 = vsub.f32 %v975, %v1090
      %v1092 = vmul.f32 %v1084, %v1089
      %v1093 = vmul.f32 %v1087, %v1091
      %v1094 = vsub.f32 %v1092, %v1093
      %v1095 = vmul.f32 %v1084, %v1091
      %v1096 = vmul.f32 %v1087, %v1089
      %v1097 = vadd.f32 %v1095, %v1096
      %v1098 = vmul.f32 %v1094, %v1094
      %v1099 = vmul.f32 %v1097, %v1097
      %v1100 = vadd.f32 %v1098, %v1099
      %v1101 = vrcp.pop %v1100
      %v1102 = vmul.f32 %v1026, %v1094
      %v1103 = vmul.f32 %v1029, %v1097
      %v1104 = vadd.f32 %v1102, %v1103
      %v1105 = vmul.f32 %v1104, %v1101
      %v1106 = vmul.f32 %v1029, %v1094
      %v1107 = vmul.f32 %v1026, %v1097
      %v1108 = vsub.f32 %v1106, %v1107
      %v1109 = vmul.f32 %v1108, %v1101
      %v1110 = vsub.f32 %v974, %v1105
      %v1111 = vsub.f32 %v975, %v1109
      %v1112 = vmul.f32 %v1111, 0.0
      %v1113 = vsub.f32 %v1110, %v1112
      %v1114 = vadd.f32 %v1113, %v39
      %v1115 = vmul.f32 %v1110, 0.0
      %v1116 = vadd.f32 %v1111, %v1115
      %v1117 = vmul.f32 %v1114, %v1110
      %v1118 = vmul.f32 %v1116, %v1111
      %v1119 = vsub.f32 %v1117, %v1118
      %v1120 = vadd.f32 %v1119, %v43
      %v1121 = vmul.f32 %v1114, %v1111
      %v1122 = vmul.f32 %v1116, %v1110
      %v1123 = vadd.f32 %v1121, %v1122
      %v1124 = vmul.f32 %v1120, %v1110
      %v1125 = vmul.f32 %v1123, %v1111
      %v1126 = vsub.f32 %v1124, %v1125
      %v1127 = vadd.f32 %v1126, %v47
      %v1128 = vmul.f32 %v1120, %v1111
      %v1129 = vmul.f32 %v1123, %v1110
      %v1130 = vadd.f32 %v1128, %v1129
      %v1131 = vmul.f32 %v1127, %v1110
      %v1132 = vmul.f32 %v1130, %v1111
      %v1133 = vsub.f32 %v1131, %v1132
      %v1134 = vadd.f32 %v1133, %v51
      %v1135 = vmul.f32 %v1127, %v1111
      %v1136 = vmul.f32 %v1130, %v1110
      %v1137 = vadd.f32 %v1135, %v1136
      %v1138 = vmul.f32 %v1134, %v1110
      %v1139 = vmul.f32 %v1137, %v1111
      %v1140 = vsub.f32 %v1138, %v1139
      %v1141 = vadd.f32 %v1140, %v55
      %v1142 = vmul.f32 %v1134, %v1111
      %v1143 = vmul.f32 %v1137, %v1110
      %v1144 = vadd.f32 %v1142, %v1143
      %v1145 = vmul.f32 %v1141, %v1110
      %v1146 = vmul.f32 %v1144, %v1111
      %v1147 = vsub.f32 %v1145, %v1146
      %v1148 = vadd.f32 %v1147, %v59
      %v1149 = vmul.f32 %v1141, %v1111
      %v1150 = vmul.f32 %v1144, %v1110
      %v1151 = vadd.f32 %v1149, %v1150
      %v1152 = vmul.f32 %v1148, %v1110
      %v1153 = vmul.f32 %v1151, %v1111
      %v1154 = vsub.f32 %v1152, %v1153
      %v1155 = vadd.f32 %v1154, %v63
      %v1156 = vmul.f32 %v1148, %v1111
      %v1157 = vmul.f32 %v1151, %v1110
      %v1158 = vadd.f32 %v1156, %v1157
      %v1159 = vmul.f32 %v1155, %v1110
      %v1160 = vmul.f32 %v1158, %v1111
      %v1161 = vsub.f32 %v1159, %v1160
      %v1162 = vadd.f32 %v1161, %v67
      %v1163 = vmul.f32 %v1155, %v1111
      %v1164 = vmul.f32 %v1158, %v1110
      %v1165 = vadd.f32 %v1163, %v1164
      %v1166 = vrot.slane %v1110, 7
      %v1167 = vsub.f32 %v1110, %v1166
      %v1168 = vrot.slane %v1111, 7
      %v1169 = vsub.f32 %v1111, %v1168
      %v1170 = vmul.f32 %v1169, 0.0
      %v1171 = vsub.f32 %v1167, %v1170
      %v1172 = vmul.f32 %v1167, 0.0
      %v1173 = vadd.f32 %v1169, %v1172
      %v1174 = vrot.slane %v1110, 6
      %v1175 = vsub.f32 %v1110, %v1174
      %v1176 = vrot.slane %v1111, 6
      %v1177 = vsub.f32 %v1111, %v1176
      %v1178 = vmul.f32 %v1171, %v1175
      %v1179 = vmul.f32 %v1173, %v1177
      %v1180 = vsub.f32 %v1178, %v1179
      %v1181 = vmul.f32 %v1171, %v1177
      %v1182 = vmul.f32 %v1173, %v1175
      %v1183 = vadd.f32 %v1181, %v1182
      %v1184 = vrot.slane %v1110, 5
      %v1185 = vsub.f32 %v1110, %v1184
      %v1186 = vrot.slane %v1111, 5
      %v1187 = vsub.f32 %v1111, %v1186
      %v1188 = vmul.f32 %v1180, %v1185
      %v1189 = vmul.f32 %v1183, %v1187
      %v1190 = vsub.f32 %v1188, %v1189
      %v1191 = vmul.f32 %v1180, %v1187
      %v1192 = vmul.f32 %v1183, %v1185
      %v1193 = vadd.f32 %v1191, %v1192
      %v1194 = vrot.slane %v1110, 4
      %v1195 = vsub.f32 %v1110, %v1194
      %v1196 = vrot.slane %v1111, 4
      %v1197 = vsub.f32 %v1111, %v1196
      %v1198 = vmul.f32 %v1190, %v1195
      %v1199 = vmul.f32 %v1193, %v1197
      %v1200 = vsub.f32 %v1198, %v1199
      %v1201 = vmul.f32 %v1190, %v1197
      %v1202 = vmul.f32 %v1193, %v1195
      %v1203 = vadd.f32 %v1201, %v1202
      %v1204 = vrot.slane %v1110, 3
      %v1205 = vsub.f32 %v1110, %v1204
      %v1206 = vrot.slane %v1111, 3
      %v1207 = vsub.f32 %v1111, %v1206
      %v1208 = vmul.f32 %v1200, %v1205
      %v1209 = vmul.f32 %v1203, %v1207
      %v1210 = vsub.f32 %v1208, %v1209
      %v1211 = vmul.f32 %v1200, %v1207
      %v1212 = vmul.f32 %v1203, %v1205
      %v1213 = vadd.f32 %v1211, %v1212
      %v1214 = vrot.slane %v1110, 2
      %v1215 = vsub.f32 %v1110, %v1214
      %v1216 = vrot.slane %v1111, 2
      %v1217 = vsub.f32 %v1111, %v1216
      %v1218 = vmul.f32 %v1210, %v1215
      %v1219 = vmul.f32 %v1213, %v1217
      %v1220 = vsub.f32 %v1218, %v1219
      %v1221 = vmul.f32 %v1210, %v1217
      %v1222 = vmul.f32 %v1213, %v1215
      %v1223 = vadd.f32 %v1221, %v1222
      %v1224 = vrot.slane %v1110, 1
      %v1225 = vsub.f32 %v1110, %v1224
      %v1226 = vrot.slane %v1111, 1
      %v1227 = vsub.f32 %v1111, %v1226
      %v1228 = vmul.f32 %v1220, %v1225
      %v1229 = vmul.f32 %v1223, %v1227
      %v1230 = vsub.f32 %v1228, %v1229
      %v1231 = vmul.f32 %v1220, %v1227
      %v1232 = vmul.f32 %v1223, %v1225
      %v1233 = vadd.f32 %v1231, %v1232
      %v1234 = vmul.f32 %v1230, %v1230
      %v1235 = vmul.f32 %v1233, %v1233
      %v1236 = vadd.f32 %v1234, %v1235
      %v1237 = vrcp.pop %v1236
      %v1238 = vmul.f32 %v1162, %v1230
      %v1239 = vmul.f32 %v1165, %v1233
      %v1240 = vadd.f32 %v1238, %v1239
      %v1241 = vmul.f32 %v1240, %v1237
      %v1242 = vmul.f32 %v1165, %v1230
      %v1243 = vmul.f32 %v1162, %v1233
      %v1244 = vsub.f32 %v1242, %v1243
      %v1245 = vmul.f32 %v1244, %v1237
      %v1246 = vsub.f32 %v1110, %v1241
      %v1247 = vsub.f32 %v1111, %v1245
      %v1248 = vmul.f32 %v1247, 0.0
      %v1249 = vsub.f32 %v1246, %v1248
      %v1250 = vadd.f32 %v1249, %v39
      %v1251 = vmul.f32 %v1246, 0.0
      %v1252 = vadd.f32 %v1247, %v1251
      %v1253 = vmul.f32 %v1250, %v1246
      %v1254 = vmul.f32 %v1252, %v1247
      %v1255 = vsub.f32 %v1253, %v1254
      %v1256 = vadd.f32 %v1255, %v43
      %v1257 = vmul.f32 %v1250, %v1247
      %v1258 = vmul.f32 %v1252, %v1246
      %v1259 = vadd.f32 %v1257, %v1258
      %v1260 = vmul.f32 %v1256, %v1246
      %v1261 = vmul.f32 %v1259, %v1247
      %v1262 = vsub.f32 %v1260, %v1261
      %v1263 = vadd.f32 %v1262, %v47
      %v1264 = vmul.f32 %v1256, %v1247
      %v1265 = vmul.f32 %v1259, %v1246
      %v1266 = vadd.f32 %v1264, %v1265
      %v1267 = vmul.f32 %v1263, %v1246
      %v1268 = vmul.f32 %v1266, %v1247
      %v1269 = vsub.f32 %v1267, %v1268
      %v1270 = vadd.f32 %v1269, %v51
      %v1271 = vmul.f32 %v1263, %v1247
      %v1272 = vmul.f32 %v1266, %v1246
      %v1273 = vadd.f32 %v1271, %v1272
      %v1274 = vmul.f32 %v1270, %v1246
      %v1275 = vmul.f32 %v1273, %v1247
      %v1276 = vsub.f32 %v1274, %v1275
      %v1277 = vadd.f32 %v1276, %v55
      %v1278 = vmul.f32 %v1270, %v1247
      %v1279 = vmul.f32 %v1273, %v1246
      %v1280 = vadd.f32 %v1278, %v1279
      %v1281 = vmul.f32 %v1277, %v1246
      %v1282 = vmul.f32 %v1280, %v1247
      %v1283 = vsub.f32 %v1281, %v1282
      %v1284 = vadd.f32 %v1283, %v59
      %v1285 = vmul.f32 %v1277, %v1247
      %v1286 = vmul.f32 %v1280, %v1246
      %v1287 = vadd.f32 %v1285, %v1286
      %v1288 = vmul.f32 %v1284, %v1246
      %v1289 = vmul.f32 %v1287, %v1247
      %v1290 = vsub.f32 %v1288, %v1289
      %v1291 = vadd.f32 %v1290, %v63
      %v1292 = vmul.f32 %v1284, %v1247
      %v1293 = vmul.f32 %v1287, %v1246
      %v1294 = vadd.f32 %v1292, %v1293
      %v1295 = vmul.f32 %v1291, %v1246
      %v1296 = vmul.f32 %v1294, %v1247
      %v1297 = vsub.f32 %v1295, %v1296
      %v1298 = vadd.f32 %v1297, %v67
      %v1299 = vmul.f32 %v1291, %v1247
      %v1300 = vmul.f32 %v1294, %v1246
      %v1301 = vadd.f32 %v1299, %v1300
      %v1302 = vrot.slane %v1246, 7
      %v1303 = vsub.f32 %v1246, %v1302
      %v1304 = vrot.slane %v1247, 7
      %v1305 = vsub.f32 %v1247, %v1304
      %v1306 = vmul.f32 %v1305, 0.0
      %v1307 = vsub.f32 %v1303, %v1306
      %v1308 = vmul.f32 %v1303, 0.0
      %v1309 = vadd.f32 %v1305, %v1308
      %v1310 = vrot.slane %v1246, 6
      %v1311 = vsub.f32 %v1246, %v1310
      %v1312 = vrot.slane %v1247, 6
      %v1313 = vsub.f32 %v1247, %v1312
      %v1314 = vmul.f32 %v1307, %v1311
      %v1315 = vmul.f32 %v1309, %v1313
      %v1316 = vsub.f32 %v1314, %v1315
      %v1317 = vmul.f32 %v1307, %v1313
      %v1318 = vmul.f32 %v1309, %v1311
      %v1319 = vadd.f32 %v1317, %v1318
      %v1320 = vrot.slane %v1246, 5
      %v1321 = vsub.f32 %v1246, %v1320
      %v1322 = vrot.slane %v1247, 5
      %v1323 = vsub.f32 %v1247, %v1322
      %v1324 = vmul.f32 %v1316, %v1321
      %v1325 = vmul.f32 %v1319, %v1323
      %v1326 = vsub.f32 %v1324, %v1325
      %v1327 = vmul.f32 %v1316, %v1323
      %v1328 = vmul.f32 %v1319, %v1321
      %v1329 = vadd.f32 %v1327, %v1328
      %v1330 = vrot.slane %v1246, 4
      %v1331 = vsub.f32 %v1246, %v1330
      %v1332 = vrot.slane %v1247, 4
      %v1333 = vsub.f32 %v1247, %v1332
      %v1334 = vmul.f32 %v1326, %v1331
      %v1335 = vmul.f32 %v1329, %v1333
      %v1336 = vsub.f32 %v1334, %v1335
      %v1337 = vmul.f32 %v1326, %v1333
      %v1338 = vmul.f32 %v1329, %v1331
      %v1339 = vadd.f32 %v1337, %v1338
      %v1340 = vrot.slane %v1246, 3
      %v1341 = vsub.f32 %v1246, %v1340
      %v1342 = vrot.slane %v1247, 3
      %v1343 = vsub.f32 %v1247, %v1342
      %v1344 = vmul.f32 %v1336, %v1341
      %v1345 = vmul.f32 %v1339, %v1343
      %v1346 = vsub.f32 %v1344, %v1345
      %v1347 = vmul.f32 %v1336, %v1343
      %v1348 = vmul.f32 %v1339, %v1341
      %v1349 = vadd.f32 %v1347, %v1348
      %v1350 = vrot.slane %v1246, 2
      %v1351 = vsub.f32 %v1246, %v1350
      %v1352 = vrot.slane %v1247, 2
      %v1353 = vsub.f32 %v1247, %v1352
      %v1354 = vmul.f32 %v1346, %v1351
      %v1355 = vmul.f32 %v1349, %v1353
      %v1356 = vsub.f32 %v1354, %v1355
      %v1357 = vmul.f32 %v1346, %v1353
      %v1358 = vmul.f32 %v1349, %v1351
      %v1359 = vadd.f32 %v1357, %v1358
      %v1360 = vrot.slane %v1246, 1
      %v1361 = vsub.f32 %v1246, %v1360
      %v1362 = vrot.slane %v1247, 1
      %v1363 = vsub.f32 %v1247, %v1362
      %v1364 = vmul.f32 %v1356, %v1361
      %v1365 = vmul.f32 %v1359, %v1363
      %v1366 = vsub.f32 %v1364, %v1365
      %v1367 = vmul.f32 %v1356, %v1363
      %v1368 = vmul.f32 %v1359, %v1361
      %v1369 = vadd.f32 %v1367, %v1368
      %v1370 = vmul.f32 %v1366, %v1366
      %v1371 = vmul.f32 %v1369, %v1369
      %v1372 = vadd.f32 %v1370, %v1371
      %v1373 = vrcp.pop %v1372
      %v1374 = vmul.f32 %v1298, %v1366
      %v1375 = vmul.f32 %v1301, %v1369
      %v1376 = vadd.f32 %v1374, %v1375
      %v1377 = vmul.f32 %v1376, %v1373
      %v1378 = vmul.f32 %v1301, %v1366
      %v1379 = vmul.f32 %v1298, %v1369
      %v1380 = vsub.f32 %v1378, %v1379
      %v1381 = vmul.f32 %v1380, %v1373
      %v1382 = vsub.f32 %v1246, %v1377
      %v1383 = vsub.f32 %v1247, %v1381
      %v1384 = vmul.f32 %v1377, %v1377
      %v1385 = vmul.f32 %v1381, %v1381
      %v1386 = vadd.f32 %v1384, %v1385
      %v1387 = vmul.f32 %v1382, %v1382
      %v1388 = vadd.f32 %v1387, 1.0
      %v1389 = vmul.f32 %v1383, %v1383
      %v1390 = vadd.f32 %v1388, %v1389
      %v1391 = vrcp.pop %v1390
      %v1392 = vmul.f32 %v1386, %v1391
      %1393 = vmax.xlane.f32.xlu0 %v1392
      %v1394 = vpop.xlane.xlu0 %1393
      %v1395 = vrot.slane %v1394, 4
      %v1396 = vmax.f32 %v1394, %v1395
      %v1397 = vrot.slane %v1396, 2
      %v1398 = vmax.f32 %v1396, %v1397
      %v1399 = vrot.slane %v1398, 1
      %v1400 = vmax.f32 %v1398, %v1399
      %s1401 = vtos %v1400
      %s1402 = sadd.s32 %s285, 8
    $region14: #{tpu_custom_call.1} parent=1 // loop_footer
      _
    $region15: #{tpu_custom_call.1} parent=1 // loop_footer_branch
      %284 = sbr.rel target = $region11
    $region16: #{tpu_custom_call.1} parent=1 // loop_exit
      _
    %1403 = vst [vmem:[#allocation5] sm:$0xff] %v286
    %1404 = vst [vmem:[#allocation6] sm:$0xff] %v287
    // Predicated region
    $region17: #{tpu_custom_call.1} parent=1 // pred_check
      _
    $region18: #{tpu_custom_call.1} parent=1 // pred_check_branch
      %1406 = sbr.rel (0) target = $region20
    $region19: #{tpu_custom_call.1} parent=1 // pred_region
      %s1408 = ssub.s32 128, 128
      %1409 = vsyncadd [#allocation4], %s1408
      %s1411 = sshll.u32 [#allocation5], 4
      %s1412 = int_to_ptr.vmem [resolvable:$true] %s1411
      %1414 = dma.vmem_to_hbm [thread:$0]  %s1412, 128, %s1, [#allocation4]
    $region20: #{tpu_custom_call.1} parent=1 // pred_fallthru
      _
    // Predicated region
    $region21: #{tpu_custom_call.1} parent=1 // pred_check
      _
    $region22: #{tpu_custom_call.1} parent=1 // pred_check_branch
      %1416 = sbr.rel (0) target = $region24
    $region23: #{tpu_custom_call.1} parent=1 // pred_region
      %s1418 = ssub.s32 128, 128
      %1419 = vsyncadd [#allocation7], %s1418
      %s1421 = sshll.u32 [#allocation6], 4
      %s1422 = int_to_ptr.vmem [resolvable:$true] %s1421
      %1424 = dma.vmem_to_hbm [thread:$0]  %s1422, 128, %s2, [#allocation7]
    $region24: #{tpu_custom_call.1} parent=1 // pred_fallthru
      _
    // Predicated region
    $region25: #{tpu_custom_call.1} parent=1 // pred_check
      _
    $region26: #{tpu_custom_call.1} parent=1 // pred_check_branch
      %1426 = sbr.rel (0) target = $region28
    $region27: #{tpu_custom_call.1} parent=1 // pred_region
      %1427 = dma.done [#allocation4], 128
    $region28: #{tpu_custom_call.1} parent=1 // pred_fallthru
      _
    // Predicated region
    $region29: #{tpu_custom_call.1} parent=1 // pred_check
      _
    $region30: #{tpu_custom_call.1} parent=1 // pred_check_branch
      %1429 = sbr.rel (0) target = $region32
    $region31: #{tpu_custom_call.1} parent=1 // pred_region
      %1430 = dma.done [#allocation7], 128
    $region32: #{tpu_custom_call.1} parent=1 // pred_fallthru
      _
    %1431 = vsyncpa [#allocation3], 1
    %1432 = vsyncpa [#allocation4], 1
    %1433 = vsyncpa [#allocation7], 1

</llo_original>
